<compile_context>
chip_gen: v7x
topology: tpu7x:2x2x1
jax: 0.10.0
libtpu: 0.0.40
codegen_flags: <defaults>
</compile_context>

<pallas_src>
import functools

import jax
import jax.numpy as jnp
from jax import lax
from jax.experimental import pallas as pl
from jax.experimental.pallas import tpu as pltpu

_LANE = 128
# Lane-tile cap: both DCM kernels are pure HBM streaming, so pick the biggest
# 128-multiple tile whose double-buffered working set (+ f32 temporaries)
# comfortably fits v7x's 64 MiB VMEM (~6 MiB of buffers at 4096 lanes).
# v5e / v6e (128 MiB VMEM) can raise this to 8192-16384.
_MAX_LANE_TILE = 4096
_VMEM_LIMIT = 56 * 1024 * 1024   # <= v7x's 64 MiB physical, leaves scratch headroom


# ----------------------------- Pallas kernels ---------------------------------

def sra_pool_kernel(a_ref, s1_ref, s2_ref, wmm_ref, ws1_ref, ws2_ref, bd_ref,
                    p_ref, pmm_ref, ps1_ref, ps2_ref):
    """SRA spatial softmax map + raw per-channel pools (accumulated over n)."""
    f32 = jnp.float32
    a = a_ref[0]          # (C,  TN) stream dtype (bf16)
    s1 = s1_ref[0]        # (C1, TN)
    s2 = s2_ref[0]        # (C2, TN)

    # 1x1x1 convs as aligned (8,C)x(C,TN) MXU matvecs (the weight row sits in
    # sublane 0, rows 1..7 are zero).  The sm weights carry a folded minus
    # sign so the three results simply add, and the two conv biases collapse
    # to a single SMEM scalar difference.
    ct8 = (jnp.dot(wmm_ref[...], a, preferred_element_type=f32)
           + jnp.dot(ws1_ref[...], s1, preferred_element_type=f32)
           + jnp.dot(ws2_ref[...], s2, preferred_element_type=f32))   # (8, TN)
    ct_diff = ct8[0:1, :] + bd_ref[0, 0]                               # (1, TN)
    p = jax.nn.sigmoid(ct_diff)      # == softmax([ct_mm, ct_sm], ch-axis)[0]
    q = 1.0 - p
    p_ref[0] = p.astype(p_ref.dtype)

    @pl.when(pl.program_id(1) == 0)
    def _init():
        pmm_ref[...] = jnp.zeros_like(pmm_ref)
        ps1_ref[...] = jnp.zeros_like(ps1_ref)
        ps2_ref[...] = jnp.zeros_like(ps2_ref)

    # Raw f32 sums of the spatially re-weighted features; the 1/N scaling is
    # folded into the tiny JAX gate-MLP input (no in-kernel finalize pass).
    pmm_ref[0] += jnp.sum(a.astype(f32) * p, axis=1, keepdims=True)    # (C, 1)
    ps1_ref[0] += jnp.sum(s1.astype(f32) * q, axis=1, keepdims=True)   # (C1, 1)
    ps2_ref[0] += jnp.sum(s2.astype(f32) * q, axis=1, keepdims=True)   # (C2, 1)


def combine_kernel(a_ref, s1_ref, s2_ref, p_ref, gmm_ref, gs1_ref, gs2_ref,
                   out_ref):
    """CRA recombination, recomputing fea_mm / fea_sm on the fly from p."""
    f32 = jnp.float32
    c1 = s1_ref.shape[1]
    c = a_ref.shape[1]
    p = p_ref[0]                     # (1, TN) f32 -- same p the pools used
    q = 1.0 - p
    out_ref[0, :c1] = (gmm_ref[0, :c1] * (a_ref[0, :c1].astype(f32) * p)
                       + gs1_ref[0] * (s1_ref[0].astype(f32) * q)
                       ).astype(out_ref.dtype)
    out_ref[0, c1:c] = (gmm_ref[0, c1:c] * (a_ref[0, c1:c].astype(f32) * p)
                        + gs2_ref[0] * (s2_ref[0].astype(f32) * q)
                        ).astype(out_ref.dtype)


# ----------------------------- DCM wrapper -------------------------------------

def _round_up(x, m):
    return (x + m - 1) // m * m


def _pick_lane_tile(n_pad, requested=None, max_tile=_MAX_LANE_TILE):
    """n_pad is already a multiple of 128; tiles must be 128-multiples."""
    if requested is not None:
        if requested % _LANE != 0:
            raise ValueError(f"lane_tile {requested} must be a multiple of {_LANE}")
        if n_pad % requested != 0:
            raise ValueError(f"lane_tile {requested} must divide padded N={n_pad}")
        return requested
    if n_pad <= max_tile:
        return n_pad
    t = (max_tile // _LANE) * _LANE
    while n_pad % t:
        t -= _LANE
    return t


def _pad_lanes(x, n_pad):
    n = x.shape[-1]
    if n == n_pad:
        return x
    return jnp.pad(x, ((0, 0), (0, 0), (0, n_pad - n)))


def _row8(w_row, dtype):
    # (C,) weight row placed in sublane 0 of an (8, C) operand so the in-kernel
    # matvec is an (8,128)-aligned MXU matmul (rows 1..7 are zero).
    return jnp.pad(w_row.reshape(1, -1), ((0, 7), (0, 0))).astype(dtype)


def dcm_forward(params, all_x, sm_t1c, sm_fl, *, lane_tile=None,
                stream_dtype=jnp.bfloat16):
    """DCM (SRA + CRA) using the two Pallas kernels above."""
    B, C, D, H, W = all_x.shape
    C1 = sm_t1c.shape[1]
    C2 = sm_fl.shape[1]
    assert C1 + C2 == C
    assert C1 % 8 == 0, "combine_kernel's sublane split requires C1 % 8 == 0"
    N = D * H * W
    f32 = jnp.float32

    # Stream the feature tensors in bf16 (halves HBM bytes for both passes);
    # zero-pad the lane axis to a 128 multiple (padded lanes contribute 0).
    n_pad = _round_up(N, _LANE)
    a = _pad_lanes(all_x.reshape(B, C, N).astype(stream_dtype), n_pad)
    s1 = _pad_lanes(sm_t1c.reshape(B, C1, N).astype(stream_dtype), n_pad)
    s2 = _pad_lanes(sm_fl.reshape(B, C2, N).astype(stream_dtype), n_pad)

    tn = _pick_lane_tile(n_pad, lane_tile)
    nt = n_pad // tn

    w_mm = _row8(params["conv_w_mm"][:, 0], stream_dtype)          # (8, C)
    w_s1 = _row8(-params["conv_w_sm"][:C1, 0], stream_dtype)       # (8, C1), sign folded
    w_s2 = _row8(-params["conv_w_sm"][C1:, 0], stream_dtype)       # (8, C2), sign folded
    b_diff = (params["conv_b_mm"] - params["conv_b_sm"]).reshape(1, 1).astype(f32)

    # --- pass 1: spatial softmax map + per-channel pool sums -----------------
    # TODO(synk): for v5e/v6e, pipeline_mode=pl.Buffered(3) on the feature
    # in_specs and a larger _MAX_LANE_TILE exploit the full 128 MiB VMEM.
    p_map, sum_mm, sum_s1, sum_s2 = pl.pallas_call(
        sra_pool_kernel,
        out_shape=(jax.ShapeDtypeStruct((B, 1, n_pad), f32),
                   jax.ShapeDtypeStruct((B, C, 1), f32),
                   jax.ShapeDtypeStruct((B, C1, 1), f32),
                   jax.ShapeDtypeStruct((B, C2, 1), f32)),
        grid=(B, nt),
        in_specs=[pl.BlockSpec((1, C, tn), lambda b, n: (b, 0, n)),
                  pl.BlockSpec((1, C1, tn), lambda b, n: (b, 0, n)),
                  pl.BlockSpec((1, C2, tn), lambda b, n: (b, 0, n)),
                  pl.BlockSpec((8, C), lambda b, n: (0, 0)),
                  pl.BlockSpec((8, C1), lambda b, n: (0, 0)),
                  pl.BlockSpec((8, C2), lambda b, n: (0, 0)),
                  pl.BlockSpec(memory_space=pltpu.MemorySpace.SMEM)],
        out_specs=(pl.BlockSpec((1, 1, tn), lambda b, n: (b, 0, n)),
                   pl.BlockSpec((1, C, 1), lambda b, n: (b, 0, 0)),
                   pl.BlockSpec((1, C1, 1), lambda b, n: (b, 0, 0)),
                   pl.BlockSpec((1, C2, 1), lambda b, n: (b, 0, 0))),
        compiler_params=pltpu.CompilerParams(
            dimension_semantics=("parallel", "arbitrary"),
            vmem_limit_bytes=_VMEM_LIMIT),
    )(a, s1, s2, w_mm, w_s1, w_s2, b_diff)

    # --- CRA gates: tiny MLPs, far below MXU granularity -> plain JAX --------
    inv_n = 1.0 / float(N)
    aef = jnp.concatenate(
        [sum_mm[:, :, 0], sum_s1[:, :, 0], sum_s2[:, :, 0]], axis=1) * inv_n  # (B, 2C)
    h_mm = jax.nn.relu(aef @ params["w1_mm"] + params["b1_mm"])
    g_mm = jax.nn.sigmoid(h_mm @ params["w2_mm"] + params["b2_mm"])
    h_sm = jax.nn.relu(aef @ params["w1_sm"] + params["b1_sm"])
    g_sm = jax.nn.sigmoid(h_sm @ params["w2_sm"] + params["b2_sm"])

    g_mm = g_mm.astype(f32)[:, :, None]                  # (B, C, 1)
    g_s1 = g_sm[:, :C1].astype(f32)[:, :, None]          # (B, C1, 1)
    g_s2 = g_sm[:, C1:].astype(f32)[:, :, None]          # (B, C2, 1)

    # --- pass 2: gated recombination (fea recomputed in-register) ------------
    out = pl.pallas_call(
        combine_kernel,
        out_shape=jax.ShapeDtypeStruct((B, C, n_pad), stream_dtype),
        grid=(B, nt),
        in_specs=[pl.BlockSpec((1, C, tn), lambda b, n: (b, 0, n)),
                  pl.BlockSpec((1, C1, tn), lambda b, n: (b, 0, n)),
                  pl.BlockSpec((1, C2, tn), lambda b, n: (b, 0, n)),
                  pl.BlockSpec((1, 1, tn), lambda b, n: (b, 0, n)),
                  pl.BlockSpec((1, C, 1), lambda b, n: (b, 0, 0)),
                  pl.BlockSpec((1, C1, 1), lambda b, n: (b, 0, 0)),
                  pl.BlockSpec((1, C2, 1), lambda b, n: (b, 0, 0))],
        out_specs=pl.BlockSpec((1, C, tn), lambda b, n: (b, 0, n)),
        compiler_params=pltpu.CompilerParams(
            dimension_semantics=("parallel", "parallel"),
            vmem_limit_bytes=_VMEM_LIMIT),
    )(a, s1, s2, p_map, g_mm, g_s1, g_s2)

    if n_pad != N:
        out = out[:, :, :N]
    return out.reshape(B, C, D, H, W)


def dcm_reference(params, all_x, sm_t1c, sm_fl, **_):
    """Pure-JAX f32 reference mirroring the PyTorch DCM forward."""
    hi = lax.Precision.HIGHEST   # precision scoped to the reference only
    sm_cat = jnp.concatenate([sm_t1c, sm_fl], axis=1)
    w_mm = params["conv_w_mm"][:, 0]
    w_sm = params["conv_w_sm"][:, 0]
    ct_mm = jnp.einsum("bcdhw,c->bdhw", all_x, w_mm,
                       precision=hi) + params["conv_b_mm"][0, 0]
    ct_sm = jnp.einsum("bcdhw,c->bdhw", sm_cat, w_sm,
                       precision=hi) + params["conv_b_sm"][0, 0]
    ct = jnp.stack([ct_mm, ct_sm], axis=1)
    ctp = jax.nn.softmax(ct, axis=1)
    fea_mm = all_x * ctp[:, 0:1]
    fea_sm = sm_cat * ctp[:, 1:2]
    aef = jnp.concatenate([fea_mm, fea_sm], axis=1).mean(axis=(2, 3, 4))
    g_mm = jax.nn.sigmoid(
        jnp.maximum(aef @ params["w1_mm"] + params["b1_mm"], 0.0)
        @ params["w2_mm"] + params["b2_mm"])
    g_sm = jax.nn.sigmoid(
        jnp.maximum(aef @ params["w1_sm"] + params["b1_sm"], 0.0)
        @ params["w2_sm"] + params["b2_sm"])
    return (g_mm[:, :, None, None, None] * fea_mm
            + g_sm[:, :, None, None, None] * fea_sm)


# ----------------------------- surrounding layers (XLA) ------------------------
# The dense 3-D convs dominate MM_block5 FLOPs: run them as bf16 MXU ops with
# f32 accumulation instead of multi-pass "highest" f32.

def conv3d_k3p1(x, w, b):
    y = lax.conv_general_dilated(
        x.astype(jnp.bfloat16), w.astype(jnp.bfloat16),
        window_strides=(1, 1, 1), padding=((1, 1), (1, 1), (1, 1)),
        dimension_numbers=("NCDHW", "OIDHW", "NCDHW"),
        preferred_element_type=jnp.float32)
    return y + b[None, :, None, None, None]


def instance_norm(x, eps=1e-5):
    mean = jnp.mean(x, axis=(2, 3, 4), keepdims=True)
    var = jnp.mean(jnp.square(x - mean), axis=(2, 3, 4), keepdims=True)
    return (x - mean) * lax.rsqrt(var + eps)


def leaky_relu(x, slope=0.01):
    return jnp.where(x >= 0, x, slope * x)


def conv_transpose3d_k2s2(x, w, b):
    # ConvTranspose3d(k=2, s=2, p=0): stride == kernel -> every output voxel has
    # exactly one contribution, so it reduces to an einsum + reshape.
    B, _, D, H, W = x.shape
    c_out = w.shape[1]
    y = jnp.einsum("bcdhw,coijk->bodihjwk",
                   x.astype(jnp.bfloat16), w.astype(jnp.bfloat16),
                   preferred_element_type=jnp.float32)
    y = y.reshape(B, c_out, 2 * D, 2 * H, 2 * W)
    return y + b[None, :, None, None, None]


def _mm_block5(params, x, x_d, sm_t1c, sm_fl, dcm):
    x = jnp.concatenate([x, x_d], axis=1)
    x = leaky_relu(instance_norm(conv3d_k3p1(x, params["conv0_w"], params["conv0_b"])))
    x = dcm(params, x, sm_t1c, sm_fl)
    x = leaky_relu(instance_norm(conv3d_k3p1(x, params["conv1_w"], params["conv1_b"])))
    x = conv_transpose3d_k2s2(x, params["up_w"], params["up_b"])
    return x


def mm_block5_pallas(params, x, x_d, sm_t1c, sm_fl, *, lane_tile=None):
    return _mm_block5(params, x, x_d, sm_t1c, sm_fl,
                      functools.partial(dcm_forward, lane_tile=lane_tile))


def mm_block5_reference(params, x, x_d, sm_t1c, sm_fl):
    return _mm_block5(params, x, x_d, sm_t1c, sm_fl, dcm_reference)


# ----------------------------- params -----------------------------------------

def init_params(key, c_cat=256, c_mid=128, c_up=64):
    ks = iter(jax.random.split(key, 20))

    def nrm(shape, scale):
        return scale * jax.random.normal(next(ks), shape, jnp.float32)

    C = c_mid
    return {
        # conv_0: Conv3d(256, 128, k=3, p=1)
        "conv0_w": nrm((c_mid, c_cat, 3, 3, 3), 0.02),
        "conv0_b": nrm((c_mid,), 0.02),
        # DCM / SRA: Conv3d(C, 1, k=1) weights as (C, 1), biases as (1, 1)
        "conv_w_mm": nrm((C, 1), 0.1),
        "conv_b_mm": jnp.full((1, 1), 0.05, jnp.float32),
        "conv_w_sm": nrm((C, 1), 0.1),
        "conv_b_sm": jnp.full((1, 1), -0.05, jnp.float32),
        # DCM / CRA: Linear weights stored (in, out) == torch weight.T
        "w1_mm": nrm((2 * C, C), 0.1), "b1_mm": nrm((1, C), 0.1),
        "w2_mm": nrm((C, C), 0.1),     "b2_mm": nrm((1, C), 0.1),
        "w1_sm": nrm((2 * C, C), 0.1), "b1_sm": nrm((1, C), 0.1),
        "w2_sm": nrm((C, C), 0.1),     "b2_sm": nrm((1, C), 0.1),
        # conv_1: Conv3d(128, 64, k=3, p=1)
        "conv1_w": nrm((c_up, c_mid, 3, 3, 3), 0.02),
        "conv1_b": nrm((c_up,), 0.02),
        # up: ConvTranspose3d(64, 64, k=2, s=2) — weight (Cin, Cout, 2, 2, 2)
        "up_w": nrm((c_up, c_up, 2, 2, 2), 0.05),
        "up_b": nrm((c_up,), 0.05),
    }


# ----------------------------- main --------------------------------------------

if __name__ == "__main__":
    # Module-implied channel counts (256 -> 128 -> 64), small spatial extent.
    B, D, H, W = 2, 4, 8, 8                    # N = D*H*W = 256
    key = jax.random.PRNGKey(0)
    k1, k2, k3, k4, k5 = jax.random.split(key, 5)

    x = jax.random.normal(k1, (B, 128, D, H, W), jnp.float32)
    x_d = jax.random.normal(k2, (B, 128, D, H, W), jnp.float32)
    sm_t1c = jax.random.normal(k3, (B, 64, D, H, W), jnp.float32)
    sm_fl = jax.random.normal(k4, (B, 64, D, H, W), jnp.float32)
    params = init_params(k5)

    # Default tiling: single full-N lane tile per batch item -> grid=(B, 1).
    fwd = jax.jit(mm_block5_pallas)
    out = jax.block_until_ready(fwd(params, x, x_d, sm_t1c, sm_fl))
    assert out.shape == (B, 64, 2 * D, 2 * H, 2 * W), out.shape

    # Exercise the multi-tile pool-accumulation path (grid=(B, 2)); it must
    # match the single-tile run up to f32 accumulation-order noise.
    fwd_tiled = jax.jit(functools.partial(mm_block5_pallas, lane_tile=128))
    out_tiled = jax.block_until_ready(fwd_tiled(params, x, x_d, sm_t1c, sm_fl))
    tile_err = float(jnp.max(jnp.abs(out - out_tiled)))
    assert jnp.allclose(out, out_tiled, rtol=1e-2, atol=1e-2), tile_err

    # f32 reference (both paths share the same bf16 conv layers; the Pallas
    # DCM streams bf16, hence the bf16-level tolerance).
    ref = jax.block_until_ready(
        jax.jit(mm_block5_reference)(params, x, x_d, sm_t1c, sm_fl))
    max_err = float(jnp.max(jnp.abs(out - ref)))
    assert jnp.allclose(out, ref, rtol=3e-2, atol=3e-2), max_err

    print("KERNEL_OK")
</pallas_src>

<mosaic_0001>
module attributes {stable_mosaic.version = 11 : i64} {
  func.func @sra_pool_kernel(%arg0: i32, %arg1: i32, %arg2: memref<1x128x256xbf16, #tpu.memory_space<vmem>>, %arg3: memref<1x64x256xbf16, #tpu.memory_space<vmem>>, %arg4: memref<1x64x256xbf16, #tpu.memory_space<vmem>>, %arg5: memref<8x128xbf16, #tpu.memory_space<vmem>>, %arg6: memref<8x64xbf16, #tpu.memory_space<vmem>>, %arg7: memref<8x64xbf16, #tpu.memory_space<vmem>>, %arg8: memref<1x1xf32, #tpu.memory_space<smem>>, %arg9: memref<1x1x256xf32, #tpu.memory_space<vmem>>, %arg10: memref<1x128x1xf32, #tpu.memory_space<vmem>>, %arg11: memref<1x64x1xf32, #tpu.memory_space<vmem>>, %arg12: memref<1x64x1xf32, #tpu.memory_space<vmem>>) attributes {dimension_semantics = [#tpu.dimension_semantics<parallel>, #tpu.dimension_semantics<arbitrary>], iteration_bounds = array<i64: 2, 1>, scalar_prefetch = 0 : i64, scratch_operands = 0 : i64, tpu.core_type = #tpu.core_type<tc>, window_params = [{transform_indices = @transform_0, window_bounds = array<i64: 1, 128, 256>}, {transform_indices = @transform_1, window_bounds = array<i64: 1, 64, 256>}, {transform_indices = @transform_2, window_bounds = array<i64: 1, 64, 256>}, {pipeline_mode = #tpu.pipeline_mode<synchronous>, transform_indices = @transform_3, window_bounds = array<i64: 8, 128>}, {pipeline_mode = #tpu.pipeline_mode<synchronous>, transform_indices = @transform_4, window_bounds = array<i64: 8, 64>}, {pipeline_mode = #tpu.pipeline_mode<synchronous>, transform_indices = @transform_5, window_bounds = array<i64: 8, 64>}, {transform_indices = @transform_6, window_bounds = array<i64: 1, 1>}, {transform_indices = @transform_7, window_bounds = array<i64: 1, 1, 256>}, {transform_indices = @transform_8, window_bounds = array<i64: 1, 128, 1>}, {transform_indices = @transform_9, window_bounds = array<i64: 1, 64, 1>}, {transform_indices = @transform_10, window_bounds = array<i64: 1, 64, 1>}]} {
    %c0 = arith.constant 0 : index
    %c0_0 = arith.constant 0 : index
    %c0_1 = arith.constant 0 : index
    %0 = vector.load %arg2[%c0, %c0_0, %c0_1] : memref<1x128x256xbf16, #tpu.memory_space<vmem>>, vector<1x128x256xbf16>
    %1 = vector.shape_cast %0 : vector<1x128x256xbf16> to vector<128x256xbf16>
    %c0_2 = arith.constant 0 : index
    %c0_3 = arith.constant 0 : index
    %c0_4 = arith.constant 0 : index
    %2 = vector.load %arg3[%c0_2, %c0_3, %c0_4] : memref<1x64x256xbf16, #tpu.memory_space<vmem>>, vector<1x64x256xbf16>
    %3 = vector.shape_cast %2 : vector<1x64x256xbf16> to vector<64x256xbf16>
    %c0_5 = arith.constant 0 : index
    %c0_6 = arith.constant 0 : index
    %c0_7 = arith.constant 0 : index
    %4 = vector.load %arg4[%c0_5, %c0_6, %c0_7] : memref<1x64x256xbf16, #tpu.memory_space<vmem>>, vector<1x64x256xbf16>
    %5 = vector.shape_cast %4 : vector<1x64x256xbf16> to vector<64x256xbf16>
    %c0_8 = arith.constant 0 : index
    %c0_9 = arith.constant 0 : index
    %6 = vector.load %arg5[%c0_8, %c0_9] : memref<8x128xbf16, #tpu.memory_space<vmem>>, vector<8x128xbf16>
    %cst = arith.constant dense<0.000000e+00> : vector<8x256xf32>
    %7 = tpu.matmul %6, %1, %cst {dimension_numbers = #tpu.dot_dimension_numbers<[1], [0], [0], [1], [0, 0, 1, 1], [], []>} : vector<8x128xbf16>, vector<128x256xbf16>, vector<8x256xf32> -> vector<8x256xf32>
    %c0_10 = arith.constant 0 : index
    %c0_11 = arith.constant 0 : index
    %8 = vector.load %arg6[%c0_10, %c0_11] : memref<8x64xbf16, #tpu.memory_space<vmem>>, vector<8x64xbf16>
    %cst_12 = arith.constant dense<0.000000e+00> : vector<8x256xf32>
    %9 = tpu.matmul %8, %3, %cst_12 {dimension_numbers = #tpu.dot_dimension_numbers<[1], [0], [0], [1], [0, 0, 1, 1], [], []>} : vector<8x64xbf16>, vector<64x256xbf16>, vector<8x256xf32> -> vector<8x256xf32>
    %10 = arith.addf %7, %9 : vector<8x256xf32>
    %c0_13 = arith.constant 0 : index
    %c0_14 = arith.constant 0 : index
    %11 = vector.load %arg7[%c0_13, %c0_14] : memref<8x64xbf16, #tpu.memory_space<vmem>>, vector<8x64xbf16>
    %cst_15 = arith.constant dense<0.000000e+00> : vector<8x256xf32>
    %12 = tpu.matmul %11, %5, %cst_15 {dimension_numbers = #tpu.dot_dimension_numbers<[1], [0], [0], [1], [0, 0, 1, 1], [], []>} : vector<8x64xbf16>, vector<64x256xbf16>, vector<8x256xf32> -> vector<8x256xf32>
    %13 = arith.addf %10, %12 : vector<8x256xf32>
    %14 = vector.extract_strided_slice %13 {offsets = [0, 0], sizes = [1, 256], strides = [1, 1]} : vector<8x256xf32> to vector<1x256xf32>
    %c0_16 = arith.constant 0 : index
    %c0_17 = arith.constant 0 : index
    %15 = memref.load %arg8[%c0_16, %c0_17] : memref<1x1xf32, #tpu.memory_space<smem>>
    %16 = vector.broadcast %15 : f32 to vector<1x256xf32>
    %17 = arith.addf %14, %16 : vector<1x256xf32>
    %18 = arith.negf %17 : vector<1x256xf32>
    %19 = math.exp %18 : vector<1x256xf32>
    %cst_18 = arith.constant 1.000000e+00 : f32
    %20 = vector.broadcast %cst_18 : f32 to vector<1x256xf32>
    %21 = arith.addf %20, %19 : vector<1x256xf32>
    %22 = arith.divf %20, %21 : vector<1x256xf32>
    %cst_19 = arith.constant 1.000000e+00 : f32
    %23 = vector.broadcast %cst_19 : f32 to vector<1x256xf32>
    %24 = arith.subf %23, %22 : vector<1x256xf32>
    %c0_20 = arith.constant 0 : index
    %c0_21 = arith.constant 0 : index
    %c0_22 = arith.constant 0 : index
    %25 = vector.load %arg9[%c0_20, %c0_21, %c0_22] : memref<1x1x256xf32, #tpu.memory_space<vmem>>, vector<1x1x256xf32>
    %26 = vector.shape_cast %25 : vector<1x1x256xf32> to vector<1x256xf32>
    %27 = vector.shape_cast %22 : vector<1x256xf32> to vector<1x1x256xf32>
    tpu.vector_store %arg9[%c0_20, %c0_21, %c0_22], %27 {strides = array<i32>} : memref<1x1x256xf32, #tpu.memory_space<vmem>>, vector<1x1x256xf32>,
    %c0_i32 = arith.constant 0 : i32
    %28 = arith.cmpi eq, %arg1, %c0_i32 : i32
    %29 = arith.extui %28 : i1 to i32
    %c0_i32_23 = arith.constant 0 : i32
    %30 = arith.cmpi ne, %29, %c0_i32_23 : i32
    scf.if %30 {
      %cst_45 = arith.constant 0.000000e+00 : f32
      %64 = vector.broadcast %cst_45 : f32 to vector<1x128x1xf32>
      %c0_46 = arith.constant 0 : index
      %c0_47 = arith.constant 0 : index
      %c0_48 = arith.constant 0 : index
      %65 = vector.load %arg10[%c0_46, %c0_47, %c0_48] : memref<1x128x1xf32, #tpu.memory_space<vmem>>, vector<1x128x1xf32>
      tpu.vector_store %arg10[%c0_46, %c0_47, %c0_48], %64 {strides = array<i32>} : memref<1x128x1xf32, #tpu.memory_space<vmem>>, vector<1x128x1xf32>,
      %cst_49 = arith.constant 0.000000e+00 : f32
      %66 = vector.broadcast %cst_49 : f32 to vector<1x64x1xf32>
      %c0_50 = arith.constant 0 : index
      %c0_51 = arith.constant 0 : index
      %c0_52 = arith.constant 0 : index
      %67 = vector.load %arg11[%c0_50, %c0_51, %c0_52] : memref<1x64x1xf32, #tpu.memory_space<vmem>>, vector<1x64x1xf32>
      tpu.vector_store %arg11[%c0_50, %c0_51, %c0_52], %66 {strides = array<i32>} : memref<1x64x1xf32, #tpu.memory_space<vmem>>, vector<1x64x1xf32>,
      %cst_53 = arith.constant 0.000000e+00 : f32
      %68 = vector.broadcast %cst_53 : f32 to vector<1x64x1xf32>
      %c0_54 = arith.constant 0 : index
      %c0_55 = arith.constant 0 : index
      %c0_56 = arith.constant 0 : index
      %69 = vector.load %arg12[%c0_54, %c0_55, %c0_56] : memref<1x64x1xf32, #tpu.memory_space<vmem>>, vector<1x64x1xf32>
      tpu.vector_store %arg12[%c0_54, %c0_55, %c0_56], %68 {strides = array<i32>} : memref<1x64x1xf32, #tpu.memory_space<vmem>>, vector<1x64x1xf32>,
    } else {
    }
    %c0_24 = arith.constant 0 : index
    %c0_25 = arith.constant 0 : index
    %c0_26 = arith.constant 0 : index
    %31 = vector.load %arg10[%c0_24, %c0_25, %c0_26] : memref<1x128x1xf32, #tpu.memory_space<vmem>>, vector<1x128x1xf32>
    %32 = vector.shape_cast %31 : vector<1x128x1xf32> to vector<128x1xf32>
    %33 = arith.extf %1 : vector<128x256xbf16> to vector<128x256xf32>
    %34 = vector.broadcast %22 : vector<1x256xf32> to vector<128x256xf32>
    %35 = arith.mulf %33, %34 : vector<128x256xf32>
    %cst_27 = arith.constant dense<0.000000e+00> : vector<128xf32>
    %36 = vector.multi_reduction <add>, %35, %cst_27 [1] : vector<128x256xf32> to vector<128xf32>
    %37 = vector.shape_cast %36 : vector<128xf32> to vector<128x1xf32>
    %38 = arith.addf %32, %37 : vector<128x1xf32>
    %c0_28 = arith.constant 0 : index
    %c0_29 = arith.constant 0 : index
    %c0_30 = arith.constant 0 : index
    %39 = vector.load %arg10[%c0_28, %c0_29, %c0_30] : memref<1x128x1xf32, #tpu.memory_space<vmem>>, vector<1x128x1xf32>
    %40 = vector.shape_cast %39 : vector<1x128x1xf32> to vector<128x1xf32>
    %41 = vector.shape_cast %38 : vector<128x1xf32> to vector<1x128x1xf32>
    tpu.vector_store %arg10[%c0_28, %c0_29, %c0_30], %41 {strides = array<i32>} : memref<1x128x1xf32, #tpu.memory_space<vmem>>, vector<1x128x1xf32>,
    %c0_31 = arith.constant 0 : index
    %c0_32 = arith.constant 0 : index
    %c0_33 = arith.constant 0 : index
    %42 = vector.load %arg11[%c0_31, %c0_32, %c0_33] : memref<1x64x1xf32, #tpu.memory_space<vmem>>, vector<1x64x1xf32>
    %43 = vector.shape_cast %42 : vector<1x64x1xf32> to vector<64x1xf32>
    %44 = arith.extf %3 : vector<64x256xbf16> to vector<64x256xf32>
    %45 = vector.broadcast %24 : vector<1x256xf32> to vector<64x256xf32>
    %46 = arith.mulf %44, %45 : vector<64x256xf32>
    %cst_34 = arith.constant dense<0.000000e+00> : vector<64xf32>
    %47 = vector.multi_reduction <add>, %46, %cst_34 [1] : vector<64x256xf32> to vector<64xf32>
    %48 = vector.shape_cast %47 : vector<64xf32> to vector<64x1xf32>
    %49 = arith.addf %43, %48 : vector<64x1xf32>
    %c0_35 = arith.constant 0 : index
    %c0_36 = arith.constant 0 : index
    %c0_37 = arith.constant 0 : index
    %50 = vector.load %arg11[%c0_35, %c0_36, %c0_37] : memref<1x64x1xf32, #tpu.memory_space<vmem>>, vector<1x64x1xf32>
    %51 = vector.shape_cast %50 : vector<1x64x1xf32> to vector<64x1xf32>
    %52 = vector.shape_cast %49 : vector<64x1xf32> to vector<1x64x1xf32>
    tpu.vector_store %arg11[%c0_35, %c0_36, %c0_37], %52 {strides = array<i32>} : memref<1x64x1xf32, #tpu.memory_space<vmem>>, vector<1x64x1xf32>,
    %c0_38 = arith.constant 0 : index
    %c0_39 = arith.constant 0 : index
    %c0_40 = arith.constant 0 : index
    %53 = vector.load %arg12[%c0_38, %c0_39, %c0_40] : memref<1x64x1xf32, #tpu.memory_space<vmem>>, vector<1x64x1xf32>
    %54 = vector.shape_cast %53 : vector<1x64x1xf32> to vector<64x1xf32>
    %55 = arith.extf %5 : vector<64x256xbf16> to vector<64x256xf32>
    %56 = vector.broadcast %24 : vector<1x256xf32> to vector<64x256xf32>
    %57 = arith.mulf %55, %56 : vector<64x256xf32>
    %cst_41 = arith.constant dense<0.000000e+00> : vector<64xf32>
    %58 = vector.multi_reduction <add>, %57, %cst_41 [1] : vector<64x256xf32> to vector<64xf32>
    %59 = vector.shape_cast %58 : vector<64xf32> to vector<64x1xf32>
    %60 = arith.addf %54, %59 : vector<64x1xf32>
    %c0_42 = arith.constant 0 : index
    %c0_43 = arith.constant 0 : index
    %c0_44 = arith.constant 0 : index
    %61 = vector.load %arg12[%c0_42, %c0_43, %c0_44] : memref<1x64x1xf32, #tpu.memory_space<vmem>>, vector<1x64x1xf32>
    %62 = vector.shape_cast %61 : vector<1x64x1xf32> to vector<64x1xf32>
    %63 = vector.shape_cast %60 : vector<64x1xf32> to vector<1x64x1xf32>
    tpu.vector_store %arg12[%c0_42, %c0_43, %c0_44], %63 {strides = array<i32>} : memref<1x64x1xf32, #tpu.memory_space<vmem>>, vector<1x64x1xf32>,
    return
  }
  func.func @transform_0(%arg0: i32, %arg1: i32) -> (i32, i32, i32) {
    %c0_i32 = arith.constant 0 : i32
    %c0_i32_0 = arith.constant 0 : i32
    return %arg0, %c0_i32, %arg1 : i32, i32, i32
  }
  func.func @transform_1(%arg0: i32, %arg1: i32) -> (i32, i32, i32) {
    %c0_i32 = arith.constant 0 : i32
    %c0_i32_0 = arith.constant 0 : i32
    return %arg0, %c0_i32, %arg1 : i32, i32, i32
  }
  func.func @transform_2(%arg0: i32, %arg1: i32) -> (i32, i32, i32) {
    %c0_i32 = arith.constant 0 : i32
    %c0_i32_0 = arith.constant 0 : i32
    return %arg0, %c0_i32, %arg1 : i32, i32, i32
  }
  func.func @transform_3(%arg0: i32, %arg1: i32) -> (i32, i32) {
    %c0_i32 = arith.constant 0 : i32
    %c0_i32_0 = arith.constant 0 : i32
    %c0_i32_1 = arith.constant 0 : i32
    return %c0_i32, %c0_i32_0 : i32, i32
  }
  func.func @transform_4(%arg0: i32, %arg1: i32) -> (i32, i32) {
    %c0_i32 = arith.constant 0 : i32
    %c0_i32_0 = arith.constant 0 : i32
    %c0_i32_1 = arith.constant 0 : i32
    return %c0_i32, %c0_i32_0 : i32, i32
  }
  func.func @transform_5(%arg0: i32, %arg1: i32) -> (i32, i32) {
    %c0_i32 = arith.constant 0 : i32
    %c0_i32_0 = arith.constant 0 : i32
    %c0_i32_1 = arith.constant 0 : i32
    return %c0_i32, %c0_i32_0 : i32, i32
  }
  func.func @transform_6(%arg0: i32, %arg1: i32) -> (i32, i32) {
    %c0_i32 = arith.constant 0 : i32
    %c0_i32_0 = arith.constant 0 : i32
    %c0_i32_1 = arith.constant 0 : i32
    return %c0_i32, %c0_i32_0 : i32, i32
  }
  func.func @transform_7(%arg0: i32, %arg1: i32) -> (i32, i32, i32) {
    %c0_i32 = arith.constant 0 : i32
    %c0_i32_0 = arith.constant 0 : i32
    return %arg0, %c0_i32, %arg1 : i32, i32, i32
  }
  func.func @transform_8(%arg0: i32, %arg1: i32) -> (i32, i32, i32) {
    %c0_i32 = arith.constant 0 : i32
    %c0_i32_0 = arith.constant 0 : i32
    %c0_i32_1 = arith.constant 0 : i32
    return %arg0, %c0_i32, %c0_i32_0 : i32, i32, i32
  }
  func.func @transform_9(%arg0: i32, %arg1: i32) -> (i32, i32, i32) {
    %c0_i32 = arith.constant 0 : i32
    %c0_i32_0 = arith.constant 0 : i32
    %c0_i32_1 = arith.constant 0 : i32
    return %arg0, %c0_i32, %c0_i32_0 : i32, i32, i32
  }
  func.func @transform_10(%arg0: i32, %arg1: i32) -> (i32, i32, i32) {
    %c0_i32 = arith.constant 0 : i32
    %c0_i32_0 = arith.constant 0 : i32
    %c0_i32_1 = arith.constant 0 : i32
    return %arg0, %c0_i32, %c0_i32_0 : i32, i32, i32
  }
}

module attributes {stable_mosaic.version = 11 : i64} {
  func.func @combine_kernel(%arg0: i32, %arg1: i32, %arg2: memref<1x128x256xbf16, #tpu.memory_space<vmem>>, %arg3: memref<1x64x256xbf16, #tpu.memory_space<vmem>>, %arg4: memref<1x64x256xbf16, #tpu.memory_space<vmem>>, %arg5: memref<1x1x256xf32, #tpu.memory_space<vmem>>, %arg6: memref<1x128x1xf32, #tpu.memory_space<vmem>>, %arg7: memref<1x64x1xf32, #tpu.memory_space<vmem>>, %arg8: memref<1x64x1xf32, #tpu.memory_space<vmem>>, %arg9: memref<1x128x256xbf16, #tpu.memory_space<vmem>>) attributes {dimension_semantics = [#tpu.dimension_semantics<parallel>, #tpu.dimension_semantics<parallel>], iteration_bounds = array<i64: 2, 1>, scalar_prefetch = 0 : i64, scratch_operands = 0 : i64, tpu.core_type = #tpu.core_type<tc>, window_params = [{transform_indices = @transform_0, window_bounds = array<i64: 1, 128, 256>}, {transform_indices = @transform_1, window_bounds = array<i64: 1, 64, 256>}, {transform_indices = @transform_2, window_bounds = array<i64: 1, 64, 256>}, {transform_indices = @transform_3, window_bounds = array<i64: 1, 1, 256>}, {transform_indices = @transform_4, window_bounds = array<i64: 1, 128, 1>}, {transform_indices = @transform_5, window_bounds = array<i64: 1, 64, 1>}, {transform_indices = @transform_6, window_bounds = array<i64: 1, 64, 1>}, {transform_indices = @transform_7, window_bounds = array<i64: 1, 128, 256>}]} {
    %c0 = arith.constant 0 : index
    %c0_0 = arith.constant 0 : index
    %c0_1 = arith.constant 0 : index
    %0 = vector.load %arg5[%c0, %c0_0, %c0_1] : memref<1x1x256xf32, #tpu.memory_space<vmem>>, vector<1x1x256xf32>
    %1 = vector.shape_cast %0 : vector<1x1x256xf32> to vector<1x256xf32>
    %cst = arith.constant 1.000000e+00 : f32
    %2 = vector.broadcast %cst : f32 to vector<1x256xf32>
    %3 = arith.subf %2, %1 : vector<1x256xf32>
    %c0_2 = arith.constant 0 : index
    %c0_3 = arith.constant 0 : index
    %c0_4 = arith.constant 0 : index
    %4 = vector.load %arg6[%c0_2, %c0_3, %c0_4] : memref<1x128x1xf32, #tpu.memory_space<vmem>>, vector<1x64x1xf32>
    %5 = vector.shape_cast %4 : vector<1x64x1xf32> to vector<64x1xf32>
    %c0_5 = arith.constant 0 : index
    %c0_6 = arith.constant 0 : index
    %c0_7 = arith.constant 0 : index
    %6 = vector.load %arg2[%c0_5, %c0_6, %c0_7] : memref<1x128x256xbf16, #tpu.memory_space<vmem>>, vector<1x64x256xbf16>
    %7 = vector.shape_cast %6 : vector<1x64x256xbf16> to vector<64x256xbf16>
    %8 = arith.extf %7 : vector<64x256xbf16> to vector<64x256xf32>
    %9 = vector.broadcast %1 : vector<1x256xf32> to vector<64x256xf32>
    %10 = arith.mulf %8, %9 : vector<64x256xf32>
    %11 = vector.broadcast %5 : vector<64x1xf32> to vector<64x256xf32>
    %12 = arith.mulf %11, %10 : vector<64x256xf32>
    %c0_8 = arith.constant 0 : index
    %c0_9 = arith.constant 0 : index
    %c0_10 = arith.constant 0 : index
    %13 = vector.load %arg7[%c0_8, %c0_9, %c0_10] : memref<1x64x1xf32, #tpu.memory_space<vmem>>, vector<1x64x1xf32>
    %14 = vector.shape_cast %13 : vector<1x64x1xf32> to vector<64x1xf32>
    %c0_11 = arith.constant 0 : index
    %c0_12 = arith.constant 0 : index
    %c0_13 = arith.constant 0 : index
    %15 = vector.load %arg3[%c0_11, %c0_12, %c0_13] : memref<1x64x256xbf16, #tpu.memory_space<vmem>>, vector<1x64x256xbf16>
    %16 = vector.shape_cast %15 : vector<1x64x256xbf16> to vector<64x256xbf16>
    %17 = arith.extf %16 : vector<64x256xbf16> to vector<64x256xf32>
    %18 = vector.broadcast %3 : vector<1x256xf32> to vector<64x256xf32>
    %19 = arith.mulf %17, %18 : vector<64x256xf32>
    %20 = vector.broadcast %14 : vector<64x1xf32> to vector<64x256xf32>
    %21 = arith.mulf %20, %19 : vector<64x256xf32>
    %22 = arith.addf %12, %21 : vector<64x256xf32>
    %23 = arith.truncf %22 : vector<64x256xf32> to vector<64x256xbf16>
    %c0_14 = arith.constant 0 : index
    %c0_15 = arith.constant 0 : index
    %c0_16 = arith.constant 0 : index
    %24 = vector.load %arg9[%c0_14, %c0_15, %c0_16] : memref<1x128x256xbf16, #tpu.memory_space<vmem>>, vector<1x64x256xbf16>
    %25 = vector.shape_cast %24 : vector<1x64x256xbf16> to vector<64x256xbf16>
    %26 = vector.shape_cast %23 : vector<64x256xbf16> to vector<1x64x256xbf16>
    tpu.vector_store %arg9[%c0_14, %c0_15, %c0_16], %26 {strides = array<i32>} : memref<1x128x256xbf16, #tpu.memory_space<vmem>>, vector<1x64x256xbf16>,
    %c0_17 = arith.constant 0 : index
    %c64 = arith.constant 64 : index
    %c0_18 = arith.constant 0 : index
    %27 = vector.load %arg6[%c0_17, %c64, %c0_18] : memref<1x128x1xf32, #tpu.memory_space<vmem>>, vector<1x64x1xf32>
    %28 = vector.shape_cast %27 : vector<1x64x1xf32> to vector<64x1xf32>
    %c0_19 = arith.constant 0 : index
    %c64_20 = arith.constant 64 : index
    %c0_21 = arith.constant 0 : index
    %29 = vector.load %arg2[%c0_19, %c64_20, %c0_21] : memref<1x128x256xbf16, #tpu.memory_space<vmem>>, vector<1x64x256xbf16>
    %30 = vector.shape_cast %29 : vector<1x64x256xbf16> to vector<64x256xbf16>
    %31 = arith.extf %30 : vector<64x256xbf16> to vector<64x256xf32>
    %32 = vector.broadcast %1 : vector<1x256xf32> to vector<64x256xf32>
    %33 = arith.mulf %31, %32 : vector<64x256xf32>
    %34 = vector.broadcast %28 : vector<64x1xf32> to vector<64x256xf32>
    %35 = arith.mulf %34, %33 : vector<64x256xf32>
    %c0_22 = arith.constant 0 : index
    %c0_23 = arith.constant 0 : index
    %c0_24 = arith.constant 0 : index
    %36 = vector.load %arg8[%c0_22, %c0_23, %c0_24] : memref<1x64x1xf32, #tpu.memory_space<vmem>>, vector<1x64x1xf32>
    %37 = vector.shape_cast %36 : vector<1x64x1xf32> to vector<64x1xf32>
    %c0_25 = arith.constant 0 : index
    %c0_26 = arith.constant 0 : index
    %c0_27 = arith.constant 0 : index
    %38 = vector.load %arg4[%c0_25, %c0_26, %c0_27] : memref<1x64x256xbf16, #tpu.memory_space<vmem>>, vector<1x64x256xbf16>
    %39 = vector.shape_cast %38 : vector<1x64x256xbf16> to vector<64x256xbf16>
    %40 = arith.extf %39 : vector<64x256xbf16> to vector<64x256xf32>
    %41 = vector.broadcast %3 : vector<1x256xf32> to vector<64x256xf32>
    %42 = arith.mulf %40, %41 : vector<64x256xf32>
    %43 = vector.broadcast %37 : vector<64x1xf32> to vector<64x256xf32>
    %44 = arith.mulf %43, %42 : vector<64x256xf32>
    %45 = arith.addf %35, %44 : vector<64x256xf32>
    %46 = arith.truncf %45 : vector<64x256xf32> to vector<64x256xbf16>
    %c0_28 = arith.constant 0 : index
    %c64_29 = arith.constant 64 : index
    %c0_30 = arith.constant 0 : index
    %47 = vector.load %arg9[%c0_28, %c64_29, %c0_30] : memref<1x128x256xbf16, #tpu.memory_space<vmem>>, vector<1x64x256xbf16>
    %48 = vector.shape_cast %47 : vector<1x64x256xbf16> to vector<64x256xbf16>
    %49 = vector.shape_cast %46 : vector<64x256xbf16> to vector<1x64x256xbf16>
    tpu.vector_store %arg9[%c0_28, %c64_29, %c0_30], %49 {strides = array<i32>} : memref<1x128x256xbf16, #tpu.memory_space<vmem>>, vector<1x64x256xbf16>,
    return
  }
  func.func @transform_0(%arg0: i32, %arg1: i32) -> (i32, i32, i32) {
    %c0_i32 = arith.constant 0 : i32
    %c0_i32_0 = arith.constant 0 : i32
    return %arg0, %c0_i32, %arg1 : i32, i32, i32
  }
  func.func @transform_1(%arg0: i32, %arg1: i32) -> (i32, i32, i32) {
    %c0_i32 = arith.constant 0 : i32
    %c0_i32_0 = arith.constant 0 : i32
    return %arg0, %c0_i32, %arg1 : i32, i32, i32
  }
  func.func @transform_2(%arg0: i32, %arg1: i32) -> (i32, i32, i32) {
    %c0_i32 = arith.constant 0 : i32
    %c0_i32_0 = arith.constant 0 : i32
    return %arg0, %c0_i32, %arg1 : i32, i32, i32
  }
  func.func @transform_3(%arg0: i32, %arg1: i32) -> (i32, i32, i32) {
    %c0_i32 = arith.constant 0 : i32
    %c0_i32_0 = arith.constant 0 : i32
    return %arg0, %c0_i32, %arg1 : i32, i32, i32
  }
  func.func @transform_4(%arg0: i32, %arg1: i32) -> (i32, i32, i32) {
    %c0_i32 = arith.constant 0 : i32
    %c0_i32_0 = arith.constant 0 : i32
    %c0_i32_1 = arith.constant 0 : i32
    return %arg0, %c0_i32, %c0_i32_0 : i32, i32, i32
  }
  func.func @transform_5(%arg0: i32, %arg1: i32) -> (i32, i32, i32) {
    %c0_i32 = arith.constant 0 : i32
    %c0_i32_0 = arith.constant 0 : i32
    %c0_i32_1 = arith.constant 0 : i32
    return %arg0, %c0_i32, %c0_i32_0 : i32, i32, i32
  }
  func.func @transform_6(%arg0: i32, %arg1: i32) -> (i32, i32, i32) {
    %c0_i32 = arith.constant 0 : i32
    %c0_i32_0 = arith.constant 0 : i32
    %c0_i32_1 = arith.constant 0 : i32
    return %arg0, %c0_i32, %c0_i32_0 : i32, i32, i32
  }
  func.func @transform_7(%arg0: i32, %arg1: i32) -> (i32, i32, i32) {
    %c0_i32 = arith.constant 0 : i32
    %c0_i32_0 = arith.constant 0 : i32
    return %arg0, %c0_i32, %arg1 : i32, i32, i32
  }
}

</mosaic_0001>

<llo_original>
// kernel: mm_block5_pallas.2
$region0: #{mm_block5_pallas.2}
  #allocation0 [shape = 'u32[]', space=smem, size = 0x4, offset = 0x4, fixed_abs, tag = 'smem constant byte address 0x4 - core index']
  #allocation1 [shape = 'u32[144,128]{1,0:T(1,128)}', space=vmem, size = 0x12000, scoped, tag = 'internal scratch']
  #allocation2 [shape = 'f32[1,1]{1,0:T(1,128)S(6)}', space=smem, size = 0x200, scoped, tag = 'scoped memory for mm_block5_pallas.2']
  %s0 = inlined_call_operand.vmem [shape: bf16[2,128,256], index: 0, kind: input, shape index: {}]
  %s1 = inlined_call_operand.vmem [shape: bf16[2,64,256], index: 1, kind: input, shape index: {}]
  %s2 = inlined_call_operand.vmem [shape: bf16[2,64,256], index: 2, kind: input, shape index: {}]
  %s3 = inlined_call_operand.vmem [shape: bf16[8,128], index: 3, kind: input, shape index: {}]
  %s4 = inlined_call_operand.vmem [shape: bf16[8,64], index: 4, kind: input, shape index: {}]
  %s5 = inlined_call_operand.vmem [shape: bf16[8,64], index: 5, kind: input, shape index: {}]
  %s6 = inlined_call_operand.<no memory space> [shape: f32[1,1], index: 6, kind: input, shape index: {}]
  %s7 = inlined_call_operand.vmem [shape: f32[2,1,256], index: 7, kind: output, shape index: {0}]
  %s8 = inlined_call_operand.vmem [shape: f32[2,128,1], index: 8, kind: output, shape index: {1}]
  %s9 = inlined_call_operand.vmem [shape: f32[2,64,1], index: 9, kind: output, shape index: {2}]
  %s10 = inlined_call_operand.vmem [shape: f32[2,64,1], index: 10, kind: output, shape index: {3}]
  %11 = xla_tuple %s7, %s8, %s9, %s10
  %s12 = sld [smem:[#allocation0]]
  $region89: #{mm_block5_pallas.2} parent=0
    _
  %s14 = ssub.s32 1, %s12
  %s15 = scalar_select 0, %s14, %s12
  %16 = sst [smem:[#allocation2]] %s6
  loop: start=0, step=1, limit=4
  $region2: #{mm_block5_pallas.2} parent=0 // loop_pre_header
    _
  $region3: #{mm_block5_pallas.2} parent=0 // loop_header
    %s18 = sphi 0, %s22
    %p19 = scmp.ge.s32.totalorder %s18, 4
    %s25 = sphi 0, %s37
    %s26 = sphi 0, %s33
    %s27 = sphi 0, %s25
    %s28 = sphi 0, %s26
    %s29 = sphi 0, %s27
    %s30 = sphi 0, %s28
    %s42 = sphi 0, %s44
    %s45 = sphi 0, %s42
    %s46 = sphi 0, %s45
    %s62 = sphi 0, %s46
    %s70 = sphi 0, %s72
    %s73 = sphi 0, %s70
    %s74 = sphi 0, %s73
    %s90 = sphi 0, %s74
    %s98 = sphi 0, %s100
    %s101 = sphi 0, %s98
    %s102 = sphi 0, %s101
    %s118 = sphi 0, %s102
    %s122 = sphi 0, %s122
    %s124 = sphi 0, %s122
    %s125 = sphi 0, %s124
    %s139 = sphi 0, %s125
    %s143 = sphi 0, %s143
    %s145 = sphi 0, %s143
    %s146 = sphi 0, %s145
    %s160 = sphi 0, %s146
    %s164 = sphi 0, %s164
    %s166 = sphi 0, %s164
    %s167 = sphi 0, %s166
    %s181 = sphi 0, %s167
    %s185 = sphi 0, %s185
    %s187 = sphi 0, %s185
    %s188 = sphi 0, %s187
    %s202 = sphi 0, %s188
    %s210 = sphi 0, %s212
    %s213 = sphi 0, %s210
    %s214 = sphi 0, %s213
    %s230 = sphi 0, %s214
    %s236 = sphi 0, %s238
    %s239 = sphi 0, %s236
    %s240 = sphi 0, %s239
    %s256 = sphi 0, %s240
    %s262 = sphi 0, %s264
    %s265 = sphi 0, %s262
    %s266 = sphi 0, %s265
    %s282 = sphi 0, %s266
    %s288 = sphi 0, %s290
    %s291 = sphi 0, %s288
    %s292 = sphi 0, %s291
    %s308 = sphi 0, %s292
  $region4: #{mm_block5_pallas.2} parent=0 // loop_header_branch
    %21 = sbr.rel (%p19) target = $region8
  $region5: #{mm_block5_pallas.2} parent=0 // loop_body
    %s23 = ssub.s32 %s18, 1
    %s24 = ssub.s32 %s18, 2
    %s31 = sadd.s32 1, %s26
    %p32 = scmp.ge.s32.totalorder %s31, 1
    %s33 = scalar_select %p32, 0, %s31
    %s34 = sadd.s32 1, %s25
    %s35 = scalar_select %p32, %s34, %s25
    %p36 = scmp.ge.s32.totalorder %s35, 2
    %s37 = scalar_select %p36, 0, %s35
    %s38 = ssub.s32 %s25, %s37
    %s39 = ssub.s32 %s26, %s33
    %s40 = sor.u32 %s38, %s39
    %p41 = scmp.eq.s32.totalorder %s40, 0
    %s43 = sadd.s32 %s42, 1
    %s44 = scalar_select %p41, %s42, %s43
    %p47 = pneg %p41
    %p48 = scmp.eq.s32.totalorder %s18, 1
    %p49 = por %p47, %p48
    %p50 = scmp.ne.s32.totalorder %s42, %s45
    %p51 = scmp.eq.s32.totalorder %s18, 0
    %p52 = por %p50, %p51
    %p53 = scmp.ne.s32.totalorder %s42, %s45
    %p54 = scmp.eq.s32.totalorder %s23, 1
    %p55 = por %p53, %p54
    %p56 = scmp.ne.s32.totalorder %s45, %s46
    %p57 = scmp.eq.s32.totalorder %s23, 0
    %p58 = por %p56, %p57
    %p59 = scmp.ne.s32.totalorder %s45, %s46
    %p60 = scmp.eq.s32.totalorder %s24, 1
    %p61 = por %p59, %p60
    %p63 = scmp.ne.s32.totalorder %s46, %s62
    %p64 = scmp.eq.s32.totalorder %s24, 0
    %p65 = por %p63, %p64
    %s66 = ssub.s32 %s25, %s37
    %s67 = ssub.s32 %s26, %s33
    %s68 = sor.u32 %s66, %s67
    %p69 = scmp.eq.s32.totalorder %s68, 0
    %s71 = sadd.s32 %s70, 1
    %s72 = scalar_select %p69, %s70, %s71
    %p75 = pneg %p69
    %p76 = scmp.eq.s32.totalorder %s18, 1
    %p77 = por %p75, %p76
    %p78 = scmp.ne.s32.totalorder %s70, %s73
    %p79 = scmp.eq.s32.totalorder %s18, 0
    %p80 = por %p78, %p79
    %p81 = scmp.ne.s32.totalorder %s70, %s73
    %p82 = scmp.eq.s32.totalorder %s23, 1
    %p83 = por %p81, %p82
    %p84 = scmp.ne.s32.totalorder %s73, %s74
    %p85 = scmp.eq.s32.totalorder %s23, 0
    %p86 = por %p84, %p85
    %p87 = scmp.ne.s32.totalorder %s73, %s74
    %p88 = scmp.eq.s32.totalorder %s24, 1
    %p89 = por %p87, %p88
    %p91 = scmp.ne.s32.totalorder %s74, %s90
    %p92 = scmp.eq.s32.totalorder %s24, 0
    %p93 = por %p91, %p92
    %s94 = ssub.s32 %s25, %s37
    %s95 = ssub.s32 %s26, %s33
    %s96 = sor.u32 %s94, %s95
    %p97 = scmp.eq.s32.totalorder %s96, 0
    %s99 = sadd.s32 %s98, 1
    %s100 = scalar_select %p97, %s98, %s99
    %p103 = pneg %p97
    %p104 = scmp.eq.s32.totalorder %s18, 1
    %p105 = por %p103, %p104
    %p106 = scmp.ne.s32.totalorder %s98, %s101
    %p107 = scmp.eq.s32.totalorder %s18, 0
    %p108 = por %p106, %p107
    %p109 = scmp.ne.s32.totalorder %s98, %s101
    %p110 = scmp.eq.s32.totalorder %s23, 1
    %p111 = por %p109, %p110
    %p112 = scmp.ne.s32.totalorder %s101, %s102
    %p113 = scmp.eq.s32.totalorder %s23, 0
    %p114 = por %p112, %p113
    %p115 = scmp.ne.s32.totalorder %s101, %s102
    %p116 = scmp.eq.s32.totalorder %s24, 1
    %p117 = por %p115, %p116
    %p119 = scmp.ne.s32.totalorder %s102, %s118
    %p120 = scmp.eq.s32.totalorder %s24, 0
    %p121 = por %p119, %p120
    %s123 = sadd.s32 %s122, 1
    %p126 = scmp.eq.s32.totalorder %s18, 1
    %p127 = scmp.ne.s32.totalorder %s122, %s124
    %p128 = scmp.eq.s32.totalorder %s18, 0
    %p129 = por %p127, %p128
    %p130 = scmp.ne.s32.totalorder %s122, %s124
    %p131 = scmp.eq.s32.totalorder %s23, 1
    %p132 = por %p130, %p131
    %p133 = scmp.ne.s32.totalorder %s124, %s125
    %p134 = scmp.eq.s32.totalorder %s23, 0
    %p135 = por %p133, %p134
    %p136 = scmp.ne.s32.totalorder %s124, %s125
    %p137 = scmp.eq.s32.totalorder %s24, 1
    %p138 = por %p136, %p137
    %p140 = scmp.ne.s32.totalorder %s125, %s139
    %p141 = scmp.eq.s32.totalorder %s24, 0
    %p142 = por %p140, %p141
    %s144 = sadd.s32 %s143, 1
    %p147 = scmp.eq.s32.totalorder %s18, 1
    %p148 = scmp.ne.s32.totalorder %s143, %s145
    %p149 = scmp.eq.s32.totalorder %s18, 0
    %p150 = por %p148, %p149
    %p151 = scmp.ne.s32.totalorder %s143, %s145
    %p152 = scmp.eq.s32.totalorder %s23, 1
    %p153 = por %p151, %p152
    %p154 = scmp.ne.s32.totalorder %s145, %s146
    %p155 = scmp.eq.s32.totalorder %s23, 0
    %p156 = por %p154, %p155
    %p157 = scmp.ne.s32.totalorder %s145, %s146
    %p158 = scmp.eq.s32.totalorder %s24, 1
    %p159 = por %p157, %p158
    %p161 = scmp.ne.s32.totalorder %s146, %s160
    %p162 = scmp.eq.s32.totalorder %s24, 0
    %p163 = por %p161, %p162
    %s165 = sadd.s32 %s164, 1
    %p168 = scmp.eq.s32.totalorder %s18, 1
    %p169 = scmp.ne.s32.totalorder %s164, %s166
    %p170 = scmp.eq.s32.totalorder %s18, 0
    %p171 = por %p169, %p170
    %p172 = scmp.ne.s32.totalorder %s164, %s166
    %p173 = scmp.eq.s32.totalorder %s23, 1
    %p174 = por %p172, %p173
    %p175 = scmp.ne.s32.totalorder %s166, %s167
    %p176 = scmp.eq.s32.totalorder %s23, 0
    %p177 = por %p175, %p176
    %p178 = scmp.ne.s32.totalorder %s166, %s167
    %p179 = scmp.eq.s32.totalorder %s24, 1
    %p180 = por %p178, %p179
    %p182 = scmp.ne.s32.totalorder %s167, %s181
    %p183 = scmp.eq.s32.totalorder %s24, 0
    %p184 = por %p182, %p183
    %s186 = sadd.s32 %s185, 1
    %p189 = scmp.eq.s32.totalorder %s18, 1
    %p190 = scmp.ne.s32.totalorder %s185, %s187
    %p191 = scmp.eq.s32.totalorder %s18, 0
    %p192 = por %p190, %p191
    %p193 = scmp.ne.s32.totalorder %s185, %s187
    %p194 = scmp.eq.s32.totalorder %s23, 1
    %p195 = por %p193, %p194
    %p196 = scmp.ne.s32.totalorder %s187, %s188
    %p197 = scmp.eq.s32.totalorder %s23, 0
    %p198 = por %p196, %p197
    %p199 = scmp.ne.s32.totalorder %s187, %s188
    %p200 = scmp.eq.s32.totalorder %s24, 1
    %p201 = por %p199, %p200
    %p203 = scmp.ne.s32.totalorder %s188, %s202
    %p204 = scmp.eq.s32.totalorder %s24, 0
    %p205 = por %p203, %p204
    %s206 = ssub.s32 %s25, %s37
    %s207 = ssub.s32 %s26, %s33
    %s208 = sor.u32 %s206, %s207
    %p209 = scmp.eq.s32.totalorder %s208, 0
    %s211 = sadd.s32 %s210, 1
    %s212 = scalar_select %p209, %s210, %s211
    %p215 = pneg %p209
    %p216 = scmp.eq.s32.totalorder %s18, 1
    %p217 = por %p215, %p216
    %p218 = scmp.ne.s32.totalorder %s210, %s213
    %p219 = scmp.eq.s32.totalorder %s18, 0
    %p220 = por %p218, %p219
    %p221 = scmp.ne.s32.totalorder %s210, %s213
    %p222 = scmp.eq.s32.totalorder %s23, 1
    %p223 = por %p221, %p222
    %p224 = scmp.ne.s32.totalorder %s213, %s214
    %p225 = scmp.eq.s32.totalorder %s23, 0
    %p226 = por %p224, %p225
    %p227 = scmp.ne.s32.totalorder %s213, %s214
    %p228 = scmp.eq.s32.totalorder %s24, 1
    %p229 = por %p227, %p228
    %p231 = scmp.ne.s32.totalorder %s214, %s230
    %p232 = scmp.eq.s32.totalorder %s24, 0
    %p233 = por %p231, %p232
    %s234 = ssub.s32 %s25, %s37
    %p235 = scmp.eq.s32.totalorder %s234, 0
    %s237 = sadd.s32 %s236, 1
    %s238 = scalar_select %p235, %s236, %s237
    %p241 = pneg %p235
    %p242 = scmp.eq.s32.totalorder %s18, 1
    %p243 = por %p241, %p242
    %p244 = scmp.ne.s32.totalorder %s236, %s239
    %p245 = scmp.eq.s32.totalorder %s18, 0
    %p246 = por %p244, %p245
    %p247 = scmp.ne.s32.totalorder %s236, %s239
    %p248 = scmp.eq.s32.totalorder %s23, 1
    %p249 = por %p247, %p248
    %p250 = scmp.ne.s32.totalorder %s239, %s240
    %p251 = scmp.eq.s32.totalorder %s23, 0
    %p252 = por %p250, %p251
    %p253 = scmp.ne.s32.totalorder %s239, %s240
    %p254 = scmp.eq.s32.totalorder %s24, 1
    %p255 = por %p253, %p254
    %p257 = scmp.ne.s32.totalorder %s240, %s256
    %p258 = scmp.eq.s32.totalorder %s24, 0
    %p259 = por %p257, %p258
    %s260 = ssub.s32 %s25, %s37
    %p261 = scmp.eq.s32.totalorder %s260, 0
    %s263 = sadd.s32 %s262, 1
    %s264 = scalar_select %p261, %s262, %s263
    %p267 = pneg %p261
    %p268 = scmp.eq.s32.totalorder %s18, 1
    %p269 = por %p267, %p268
    %p270 = scmp.ne.s32.totalorder %s262, %s265
    %p271 = scmp.eq.s32.totalorder %s18, 0
    %p272 = por %p270, %p271
    %p273 = scmp.ne.s32.totalorder %s262, %s265
    %p274 = scmp.eq.s32.totalorder %s23, 1
    %p275 = por %p273, %p274
    %p276 = scmp.ne.s32.totalorder %s265, %s266
    %p277 = scmp.eq.s32.totalorder %s23, 0
    %p278 = por %p276, %p277
    %p279 = scmp.ne.s32.totalorder %s265, %s266
    %p280 = scmp.eq.s32.totalorder %s24, 1
    %p281 = por %p279, %p280
    %p283 = scmp.ne.s32.totalorder %s266, %s282
    %p284 = scmp.eq.s32.totalorder %s24, 0
    %p285 = por %p283, %p284
    %s286 = ssub.s32 %s25, %s37
    %p287 = scmp.eq.s32.totalorder %s286, 0
    %s289 = sadd.s32 %s288, 1
    %s290 = scalar_select %p287, %s288, %s289
    %p293 = pneg %p287
    %p294 = scmp.eq.s32.totalorder %s18, 1
    %p295 = por %p293, %p294
    %p296 = scmp.ne.s32.totalorder %s288, %s291
    %p297 = scmp.eq.s32.totalorder %s18, 0
    %p298 = por %p296, %p297
    %p299 = scmp.ne.s32.totalorder %s288, %s291
    %p300 = scmp.eq.s32.totalorder %s23, 1
    %p301 = por %p299, %p300
    %p302 = scmp.ne.s32.totalorder %s291, %s292
    %p303 = scmp.eq.s32.totalorder %s23, 0
    %p304 = por %p302, %p303
    %p305 = scmp.ne.s32.totalorder %s291, %s292
    %p306 = scmp.eq.s32.totalorder %s24, 1
    %p307 = por %p305, %p306
    %p309 = scmp.ne.s32.totalorder %s292, %s308
    %p310 = scmp.eq.s32.totalorder %s24, 0
    %p311 = por %p309, %p310
    %p312 = scmp.le.s32.totalorder 1, %s18
    %p313 = scmp.lt.s32.totalorder %s18, 3
    %p314 = pnand %p312, %p313
    %p315 = pneg %p314
    // Predicated region
    $region9: #{mm_block5_pallas.2} parent=5 // pred_check
      _
    $region10: #{mm_block5_pallas.2} parent=5 // pred_check_branch
      %317 = sbr.rel (%p314) target = $region12
    $region11: #{mm_block5_pallas.2} parent=5 // pred_region
      %s318 = ssub.s32 %s18, 1
      // Predicated region
      $region13: #{mm_block5_pallas.2} parent=11 // pred_check
        %p319 = pneg %p135
      $region14: #{mm_block5_pallas.2} parent=11 // pred_check_branch
        %321 = sbr.rel (%p319) target = $region16
      $region15: #{mm_block5_pallas.2} parent=11 // pred_region
        _
      $region16: #{mm_block5_pallas.2} parent=11 // pred_fallthru
        _
      // Predicated region
      $region17: #{mm_block5_pallas.2} parent=11 // pred_check
        %p322 = pneg %p156
      $region18: #{mm_block5_pallas.2} parent=11 // pred_check_branch
        %324 = sbr.rel (%p322) target = $region20
      $region19: #{mm_block5_pallas.2} parent=11 // pred_region
        _
      $region20: #{mm_block5_pallas.2} parent=11 // pred_fallthru
        _
      // Predicated region
      $region21: #{mm_block5_pallas.2} parent=11 // pred_check
        %p325 = pneg %p177
      $region22: #{mm_block5_pallas.2} parent=11 // pred_check_branch
        %327 = sbr.rel (%p325) target = $region24
      $region23: #{mm_block5_pallas.2} parent=11 // pred_region
        _
      $region24: #{mm_block5_pallas.2} parent=11 // pred_fallthru
        _
      // Predicated region
      $region25: #{mm_block5_pallas.2} parent=11 // pred_check
        %p328 = pneg %p198
      $region26: #{mm_block5_pallas.2} parent=11 // pred_check_branch
        %330 = sbr.rel (%p328) target = $region28
      $region27: #{mm_block5_pallas.2} parent=11 // pred_region
        _
      $region28: #{mm_block5_pallas.2} parent=11 // pred_fallthru
        _
    $region12: #{mm_block5_pallas.2} parent=5 // pred_fallthru
      _
    %p331 = scmp.lt.s32.totalorder %s18, 2
    // Predicated region
    $region29: #{mm_block5_pallas.2} parent=5 // pred_check
      %p332 = pneg %p331
    $region30: #{mm_block5_pallas.2} parent=5 // pred_check_branch
      %334 = sbr.rel (%p332) target = $region32
    $region31: #{mm_block5_pallas.2} parent=5 // pred_region
      // Predicated region
      $region33: #{mm_block5_pallas.2} parent=31 // pred_check
        %p335 = pneg %p52
      $region34: #{mm_block5_pallas.2} parent=31 // pred_check_branch
        %337 = sbr.rel (%p335) target = $region36
      $region35: #{mm_block5_pallas.2} parent=31 // pred_region
        %s338 = smul.u32 2, %s26
        %p339 = scmp.lt.s32.totalorder %s25, 1
        %s340 = scalar_select %p339, %s25, 1
        %p341 = scmp.lt.s32.totalorder %s338, 1
        %s342 = scalar_select %p341, %s338, 1
        %s343 = smul.addr %s340, 32
        %s344 = sadd.s32 %s342, %s343
        %s345 = smul.addr %s344, 4
        %s346 = scalar_lea.vmem %s0, %s345
        %s347 = smul.u32 2, %s26
      $region36: #{mm_block5_pallas.2} parent=31 // pred_fallthru
        _
      // Predicated region
      $region37: #{mm_block5_pallas.2} parent=31 // pred_check
        %p348 = pneg %p80
      $region38: #{mm_block5_pallas.2} parent=31 // pred_check_branch
        %350 = sbr.rel (%p348) target = $region40
      $region39: #{mm_block5_pallas.2} parent=31 // pred_region
        %s351 = smul.u32 2, %s26
        %p352 = scmp.lt.s32.totalorder %s25, 1
        %s353 = scalar_select %p352, %s25, 1
        %p354 = scmp.lt.s32.totalorder %s351, 1
        %s355 = scalar_select %p354, %s351, 1
        %s356 = smul.addr %s353, 16
        %s357 = sadd.s32 %s355, %s356
        %s358 = smul.addr %s357, 4
        %s359 = scalar_lea.vmem %s1, %s358
        %s360 = smul.u32 2, %s26
      $region40: #{mm_block5_pallas.2} parent=31 // pred_fallthru
        _
      // Predicated region
      $region41: #{mm_block5_pallas.2} parent=31 // pred_check
        %p361 = pneg %p108
      $region42: #{mm_block5_pallas.2} parent=31 // pred_check_branch
        %363 = sbr.rel (%p361) target = $region44
      $region43: #{mm_block5_pallas.2} parent=31 // pred_region
        %s364 = smul.u32 2, %s26
        %p365 = scmp.lt.s32.totalorder %s25, 1
        %s366 = scalar_select %p365, %s25, 1
        %p367 = scmp.lt.s32.totalorder %s364, 1
        %s368 = scalar_select %p367, %s364, 1
        %s369 = smul.addr %s366, 16
        %s370 = sadd.s32 %s368, %s369
        %s371 = smul.addr %s370, 4
        %s372 = scalar_lea.vmem %s2, %s371
        %s373 = smul.u32 2, %s26
      $region44: #{mm_block5_pallas.2} parent=31 // pred_fallthru
        _
    $region32: #{mm_block5_pallas.2} parent=5 // pred_fallthru
      _
    %p374 = scmp.le.s32.totalorder 1, %s18
    %p375 = scmp.lt.s32.totalorder %s18, 3
    %p376 = pnand %p374, %p375
    %p377 = pneg %p376
    // Predicated region
    $region45: #{mm_block5_pallas.2} parent=5 // pred_check
      _
    $region46: #{mm_block5_pallas.2} parent=5 // pred_check_branch
      %379 = sbr.rel (%p376) target = $region48
    $region47: #{mm_block5_pallas.2} parent=5 // pred_region
      %s380 = ssub.s32 %s18, 1
      %s381 = smul.u32 2, %s28
      %p382 = scmp.lt.s32.totalorder %s27, 1
      %s383 = scalar_select %p382, %s27, 1
      %p384 = scmp.lt.s32.totalorder %s381, 1
      %s385 = scalar_select %p384, %s381, 1
      %s386 = smul.addr %s383, 32
      %s387 = sadd.s32 %s385, %s386
      %s388 = smul.addr %s387, 4
      %s389 = scalar_lea.vmem %s0, %s388
      %p390 = pneg %p58
      %p391 = pneg %p55
      %s392 = smul.u32 2, %s28
      %p393 = scmp.lt.s32.totalorder %s27, 1
      %s394 = scalar_select %p393, %s27, 1
      %p395 = scmp.lt.s32.totalorder %s392, 1
      %s396 = scalar_select %p395, %s392, 1
      %s397 = smul.addr %s394, 16
      %s398 = sadd.s32 %s396, %s397
      %s399 = smul.addr %s398, 4
      %s400 = scalar_lea.vmem %s1, %s399
      %p401 = pneg %p86
      %p402 = pneg %p83
      %s403 = smul.u32 2, %s28
      %p404 = scmp.lt.s32.totalorder %s27, 1
      %s405 = scalar_select %p404, %s27, 1
      %p406 = scmp.lt.s32.totalorder %s403, 1
      %s407 = scalar_select %p406, %s403, 1
      %s408 = smul.addr %s405, 16
      %s409 = sadd.s32 %s407, %s408
      %s410 = smul.addr %s409, 4
      %s411 = scalar_lea.vmem %s2, %s410
      %p412 = pneg %p114
      %p413 = pneg %p111
      %p414 = pneg %p135
      %p415 = pneg %p132
      %p416 = pneg %p156
      %p417 = pneg %p153
      %p418 = pneg %p177
      %p419 = pneg %p174
      %p420 = pneg %p198
      %p421 = pneg %p195
      %p422 = pneg %p226
      %p423 = pneg %p223
      %s424 = smul.u32 2, %s28
      %p425 = scmp.lt.s32.totalorder %s27, 1
      %s426 = scalar_select %p425, %s27, 1
      %p427 = scmp.lt.s32.totalorder %s424, 1
      %s428 = scalar_select %p427, %s424, 1
      %s429 = smul.addr %s426, 2
      %s430 = sadd.s32 %s428, %s429
      %s431 = scalar_lea.vmem %s7, %s430
      %p432 = pneg %p252
      %p433 = pneg %p249
      %p434 = scmp.lt.s32.totalorder %s27, 1
      %s435 = scalar_select %p434, %s27, 1
      %s436 = smul.addr %s435, 16
      %s437 = smul.addr %s436, 8
      %s438 = scalar_lea.vmem %s8, %s437
      %p439 = pneg %p278
      %p440 = pneg %p275
      %p441 = scmp.lt.s32.totalorder %s27, 1
      %s442 = scalar_select %p441, %s27, 1
      %s443 = smul.addr %s442, 8
      %s444 = smul.addr %s443, 8
      %s445 = scalar_lea.vmem %s9, %s444
      %p446 = pneg %p304
      %p447 = pneg %p301
      %p448 = scmp.lt.s32.totalorder %s27, 1
      %s449 = scalar_select %p448, %s27, 1
      %s450 = smul.addr %s449, 8
      %s451 = smul.addr %s450, 8
      %s452 = scalar_lea.vmem %s10, %s451
      %s453 = smul.u32 2, %s28
      %p454 = scmp.lt.s32.totalorder %s27, 1
      %s455 = scalar_select %p454, %s27, 1
      %p456 = scmp.lt.s32.totalorder %s453, 1
      %s457 = scalar_select %p456, %s453, 1
      %s458 = smul.addr %s455, 32
      %s459 = sadd.s32 %s457, %s458
      %s460 = smul.addr %s459, 4
      %s461 = scalar_lea.vmem %s0, %s460
      %s462 = smul.u32 2, %s28
      %s463 = smul.u32 2, %s28
      %p464 = scmp.lt.s32.totalorder %s27, 1
      %s465 = scalar_select %p464, %s27, 1
      %p466 = scmp.lt.s32.totalorder %s463, 1
      %s467 = scalar_select %p466, %s463, 1
      %s468 = smul.addr %s465, 16
      %s469 = sadd.s32 %s467, %s468
      %s470 = smul.addr %s469, 4
      %s471 = scalar_lea.vmem %s1, %s470
      %s472 = smul.u32 2, %s28
      %s473 = smul.u32 2, %s28
      %p474 = scmp.lt.s32.totalorder %s27, 1
      %s475 = scalar_select %p474, %s27, 1
      %p476 = scmp.lt.s32.totalorder %s473, 1
      %s477 = scalar_select %p476, %s473, 1
      %s478 = smul.addr %s475, 16
      %s479 = sadd.s32 %s477, %s478
      %s480 = smul.addr %s479, 4
      %s481 = scalar_lea.vmem %s2, %s480
      %s482 = smul.u32 2, %s28
      %s483 = smul.u32 2, %s28
      %p484 = scmp.lt.s32.totalorder %s27, 1
      %s485 = scalar_select %p484, %s27, 1
      %p486 = scmp.lt.s32.totalorder %s483, 1
      %s487 = scalar_select %p486, %s483, 1
      %s488 = smul.addr %s485, 2
      %s489 = sadd.s32 %s487, %s488
      %s490 = scalar_lea.vmem %s7, %s489
      %s491 = smul.u32 2, %s28
      %p492 = scmp.lt.s32.totalorder %s27, 1
      %s493 = scalar_select %p492, %s27, 1
      %s494 = smul.addr %s493, 16
      %s495 = smul.addr %s494, 8
      %s496 = scalar_lea.vmem %s8, %s495
      %p497 = scmp.lt.s32.totalorder %s27, 1
      %s498 = scalar_select %p497, %s27, 1
      %s499 = smul.addr %s498, 8
      %s500 = smul.addr %s499, 8
      %s501 = scalar_lea.vmem %s9, %s500
      %p502 = scmp.lt.s32.totalorder %s27, 1
      %s503 = scalar_select %p502, %s27, 1
      %s504 = smul.addr %s503, 8
      %s505 = smul.addr %s504, 8
      %s506 = scalar_lea.vmem %s10, %s505
      %v508 = vld [vmem:[%s461] sm:$0xff]
      %v509 = vld [vmem:[%s461 + $0x8] sm:$0xff]
      %v510 = vld [vmem:[%s461 + $0x10] sm:$0xff]
      %v511 = vld [vmem:[%s461 + $0x18] sm:$0xff]
      %v512 = vld [vmem:[%s461 + $0x20] sm:$0xff]
      %v513 = vld [vmem:[%s461 + $0x28] sm:$0xff]
      %v514 = vld [vmem:[%s461 + $0x30] sm:$0xff]
      %v515 = vld [vmem:[%s461 + $0x38] sm:$0xff]
      %v516 = vld [vmem:[%s461 + $0x40] sm:$0xff]
      %v517 = vld [vmem:[%s461 + $0x48] sm:$0xff]
      %v518 = vld [vmem:[%s461 + $0x50] sm:$0xff]
      %v519 = vld [vmem:[%s461 + $0x58] sm:$0xff]
      %v520 = vld [vmem:[%s461 + $0x60] sm:$0xff]
      %v521 = vld [vmem:[%s461 + $0x68] sm:$0xff]
      %v522 = vld [vmem:[%s461 + $0x70] sm:$0xff]
      %v523 = vld [vmem:[%s461 + $0x78] sm:$0xff]
      %v524 = vld [vmem:[%s471] sm:$0xff]
      %v525 = vld [vmem:[%s471 + $0x8] sm:$0xff]
      %v526 = vld [vmem:[%s471 + $0x10] sm:$0xff]
      %v527 = vld [vmem:[%s471 + $0x18] sm:$0xff]
      %v528 = vld [vmem:[%s471 + $0x20] sm:$0xff]
      %v529 = vld [vmem:[%s471 + $0x28] sm:$0xff]
      %v530 = vld [vmem:[%s471 + $0x30] sm:$0xff]
      %v531 = vld [vmem:[%s471 + $0x38] sm:$0xff]
      %v532 = vld [vmem:[%s481] sm:$0xff]
      %v533 = vld [vmem:[%s481 + $0x8] sm:$0xff]
      %v534 = vld [vmem:[%s481 + $0x10] sm:$0xff]
      %v535 = vld [vmem:[%s481 + $0x18] sm:$0xff]
      %v536 = vld [vmem:[%s481 + $0x20] sm:$0xff]
      %v537 = vld [vmem:[%s481 + $0x28] sm:$0xff]
      %v538 = vld [vmem:[%s481 + $0x30] sm:$0xff]
      %v539 = vld [vmem:[%s481 + $0x38] sm:$0xff]
      %v540 = vld [vmem:[%s3] sm:$0xf]
      %v541 = vld [vmem:[%s4] sm:$0xf]
      %v550 = vunpack.c.l.b16 %v524
      %v551 = vunpack.c.h.b16 %v524
      %v552 = vunpack.c.l.b16 %v525
      %v553 = vunpack.c.h.b16 %v525
      %v554 = vunpack.c.l.b16 %v526
      %v555 = vunpack.c.h.b16 %v526
      %v556 = vunpack.c.l.b16 %v527
      %v557 = vunpack.c.h.b16 %v527
      %v558 = vunpack.c.l.b16 %v528
      %v559 = vunpack.c.h.b16 %v528
      %v560 = vunpack.c.l.b16 %v529
      %v561 = vunpack.c.h.b16 %v529
      %v562 = vunpack.c.l.b16 %v530
      %v563 = vunpack.c.h.b16 %v530
      %v564 = vunpack.c.l.b16 %v531
      %v565 = vunpack.c.h.b16 %v531
      %v566 = vpack.c.b16 %v552, %v550
      %v567 = vpack.c.b16 %v553, %v551
      %v568 = vpack.c.b16 %v556, %v554
      %v569 = vpack.c.b16 %v557, %v555
      %v570 = vpack.c.b16 %v560, %v558
      %v571 = vpack.c.b16 %v561, %v559
      %v572 = vpack.c.b16 %v564, %v562
      %v573 = vpack.c.b16 %v565, %v563
      %vm582 = vcmask 523264
      %v584 = vsel %vm582, %v541, 0
      %586 = vmatprep.subr.bf16.mxu0 %v567
      %587 = vmatpush1.bf16.msra.mxu0 %v566
      %588 = vmatprep.subr.bf16.mxu0 %v569
      %589 = vmatpush1.bf16.msra.mxu0 %v568
      %590 = vmatprep.subr.bf16.mxu0 %v571
      %591 = vmatpush1.bf16.msra.mxu0 %v570
      %592 = vmatprep.subr.bf16.mxu0 %v573
      %593 = vmatpush1.bf16.msra.mxu0 %v572
      %594 = vmatprep.subr.bf16.mxu0 0
      %595 = vmatpush1.bf16.msra.mxu0 0
      %596 = vmatprep.subr.bf16.mxu0 0
      %597 = vmatpush1.bf16.msra.mxu0 0
      %598 = vmatprep.subr.bf16.mxu0 0
      %599 = vmatpush1.bf16.msra.mxu0 0
      %600 = vmatprep.subr.bf16.mxu0 0
      %601 = vmatpush1.bf16.msra.mxu0 0
      %602 = vmatprep.subr.bf16.mxu0 0
      %603 = vmatpush1.bf16.msra.mxu0 0
      %604 = vmatprep.subr.bf16.mxu0 0
      %605 = vmatpush1.bf16.msra.mxu0 0
      %606 = vmatprep.subr.bf16.mxu0 0
      %607 = vmatpush1.bf16.msra.mxu0 0
      %608 = vmatprep.subr.bf16.mxu0 0
      %609 = vmatpush1.bf16.msra.mxu0 0
      %610 = vmatprep.subr.bf16.mxu0 0
      %611 = vmatpush1.bf16.msra.mxu0 0
      %612 = vmatprep.subr.bf16.mxu0 0
      %613 = vmatpush1.bf16.msra.mxu0 0
      %614 = vmatprep.subr.bf16.mxu0 0
      %615 = vmatpush1.bf16.msra.mxu0 0
      %616 = vmatprep.subr.bf16.mxu0 0
      %617 = vmatpush1.bf16.msra.mxu0 0
      %618 = vmatprep.mubr.bf16.mxu0 0
      %619 = vmatmul.mubr.bf16.gmra.mrb[0].mxu0 %v584
      %v620 = vpop.f32.mrb[0].mxu0
      %v621 = vadd.f32 0.0, %v620
      %v622 = vpop.f32.mrb[0].mxu0
      %v623 = vadd.f32 0.0, %v622
      %v624 = vpop.f32.mrb[0].mxu0
      %v625 = vpop.f32.mrb[0].mxu0
      %626 = vdwg.mxu0
      %v643 = vunpack.c.l.b16 %v508
      %v644 = vunpack.c.h.b16 %v508
      %v645 = vunpack.c.l.b16 %v509
      %v646 = vunpack.c.h.b16 %v509
      %v647 = vunpack.c.l.b16 %v510
      %v648 = vunpack.c.h.b16 %v510
      %v649 = vunpack.c.l.b16 %v511
      %v650 = vunpack.c.h.b16 %v511
      %v651 = vunpack.c.l.b16 %v512
      %v652 = vunpack.c.h.b16 %v512
      %v653 = vunpack.c.l.b16 %v513
      %v654 = vunpack.c.h.b16 %v513
      %v655 = vunpack.c.l.b16 %v514
      %v656 = vunpack.c.h.b16 %v514
      %v657 = vunpack.c.l.b16 %v515
      %v658 = vunpack.c.h.b16 %v515
      %v659 = vunpack.c.l.b16 %v516
      %v660 = vunpack.c.h.b16 %v516
      %v661 = vunpack.c.l.b16 %v517
      %v662 = vunpack.c.h.b16 %v517
      %v663 = vunpack.c.l.b16 %v518
      %v664 = vunpack.c.h.b16 %v518
      %v665 = vunpack.c.l.b16 %v519
      %v666 = vunpack.c.h.b16 %v519
      %v667 = vunpack.c.l.b16 %v520
      %v668 = vunpack.c.h.b16 %v520
      %v669 = vunpack.c.l.b16 %v521
      %v670 = vunpack.c.h.b16 %v521
      %v671 = vunpack.c.l.b16 %v522
      %v672 = vunpack.c.h.b16 %v522
      %v673 = vunpack.c.l.b16 %v523
      %v674 = vunpack.c.h.b16 %v523
      %v675 = vpack.c.b16 %v645, %v643
      %v676 = vpack.c.b16 %v646, %v644
      %v677 = vpack.c.b16 %v649, %v647
      %v678 = vpack.c.b16 %v650, %v648
      %v679 = vpack.c.b16 %v653, %v651
      %v680 = vpack.c.b16 %v654, %v652
      %v681 = vpack.c.b16 %v657, %v655
      %v682 = vpack.c.b16 %v658, %v656
      %v683 = vpack.c.b16 %v661, %v659
      %v684 = vpack.c.b16 %v662, %v660
      %v685 = vpack.c.b16 %v665, %v663
      %v686 = vpack.c.b16 %v666, %v664
      %v687 = vpack.c.b16 %v669, %v667
      %v688 = vpack.c.b16 %v670, %v668
      %v689 = vpack.c.b16 %v673, %v671
      %v690 = vpack.c.b16 %v674, %v672
      %707 = vmatprep.subr.bf16.mxu0 %v676
      %708 = vmatpush1.bf16.msra.mxu0 %v675
      %709 = vmatprep.subr.bf16.mxu0 %v678
      %710 = vmatpush1.bf16.msra.mxu0 %v677
      %711 = vmatprep.subr.bf16.mxu0 %v680
      %712 = vmatpush1.bf16.msra.mxu0 %v679
      %713 = vmatprep.subr.bf16.mxu0 %v682
      %714 = vmatpush1.bf16.msra.mxu0 %v681
      %715 = vmatprep.subr.bf16.mxu0 %v684
      %716 = vmatpush1.bf16.msra.mxu0 %v683
      %717 = vmatprep.subr.bf16.mxu0 %v686
      %718 = vmatpush1.bf16.msra.mxu0 %v685
      %719 = vmatprep.subr.bf16.mxu0 %v688
      %720 = vmatpush1.bf16.msra.mxu0 %v687
      %721 = vmatprep.subr.bf16.mxu0 %v690
      %722 = vmatpush1.bf16.msra.mxu0 %v689
      %723 = vmatprep.subr.bf16.mxu0 0
      %724 = vmatpush1.bf16.msra.mxu0 0
      %725 = vmatprep.subr.bf16.mxu0 0
      %726 = vmatpush1.bf16.msra.mxu0 0
      %727 = vmatprep.subr.bf16.mxu0 0
      %728 = vmatpush1.bf16.msra.mxu0 0
      %729 = vmatprep.subr.bf16.mxu0 0
      %730 = vmatpush1.bf16.msra.mxu0 0
      %731 = vmatprep.subr.bf16.mxu0 0
      %732 = vmatpush1.bf16.msra.mxu0 0
      %733 = vmatprep.subr.bf16.mxu0 0
      %734 = vmatpush1.bf16.msra.mxu0 0
      %735 = vmatprep.subr.bf16.mxu0 0
      %736 = vmatpush1.bf16.msra.mxu0 0
      %737 = vmatprep.subr.bf16.mxu0 0
      %738 = vmatpush1.bf16.msra.mxu0 0
      %739 = vmatprep.mubr.bf16.mxu0 0
      %740 = vmatmul.mubr.bf16.gmra.mrb[0].mxu0 %v540
      %v741 = vpop.f32.mrb[0].mxu0
      %v742 = vadd.f32 %v621, %v741
      %v743 = vpop.f32.mrb[0].mxu0
      %v744 = vadd.f32 %v623, %v743
      %v745 = vpop.f32.mrb[0].mxu0
      %v746 = vpop.f32.mrb[0].mxu0
      %747 = vdwg.mxu0
      %v748 = vld [vmem:[%s5] sm:$0xf]
      %v757 = vunpack.c.l.b16 %v532
      %v758 = vunpack.c.h.b16 %v532
      %v759 = vunpack.c.l.b16 %v533
      %v760 = vunpack.c.h.b16 %v533
      %v761 = vunpack.c.l.b16 %v534
      %v762 = vunpack.c.h.b16 %v534
      %v763 = vunpack.c.l.b16 %v535
      %v764 = vunpack.c.h.b16 %v535
      %v765 = vunpack.c.l.b16 %v536
      %v766 = vunpack.c.h.b16 %v536
      %v767 = vunpack.c.l.b16 %v537
      %v768 = vunpack.c.h.b16 %v537
      %v769 = vunpack.c.l.b16 %v538
      %v770 = vunpack.c.h.b16 %v538
      %v771 = vunpack.c.l.b16 %v539
      %v772 = vunpack.c.h.b16 %v539
      %v773 = vpack.c.b16 %v759, %v757
      %v774 = vpack.c.b16 %v760, %v758
      %v775 = vpack.c.b16 %v763, %v761
      %v776 = vpack.c.b16 %v764, %v762
      %v777 = vpack.c.b16 %v767, %v765
      %v778 = vpack.c.b16 %v768, %v766
      %v779 = vpack.c.b16 %v771, %v769
      %v780 = vpack.c.b16 %v772, %v770
      %v790 = vsel %vm582, %v748, 0
      %792 = vmatprep.subr.bf16.mxu0 %v774
      %793 = vmatpush1.bf16.msra.mxu0 %v773
      %794 = vmatprep.subr.bf16.mxu0 %v776
      %795 = vmatpush1.bf16.msra.mxu0 %v775
      %796 = vmatprep.subr.bf16.mxu0 %v778
      %797 = vmatpush1.bf16.msra.mxu0 %v777
      %798 = vmatprep.subr.bf16.mxu0 %v780
      %799 = vmatpush1.bf16.msra.mxu0 %v779
      %800 = vmatprep.subr.bf16.mxu0 0
      %801 = vmatpush1.bf16.msra.mxu0 0
      %802 = vmatprep.subr.bf16.mxu0 0
      %803 = vmatpush1.bf16.msra.mxu0 0
      %804 = vmatprep.subr.bf16.mxu0 0
      %805 = vmatpush1.bf16.msra.mxu0 0
      %806 = vmatprep.subr.bf16.mxu0 0
      %807 = vmatpush1.bf16.msra.mxu0 0
      %808 = vmatprep.subr.bf16.mxu0 0
      %809 = vmatpush1.bf16.msra.mxu0 0
      %810 = vmatprep.subr.bf16.mxu0 0
      %811 = vmatpush1.bf16.msra.mxu0 0
      %812 = vmatprep.subr.bf16.mxu0 0
      %813 = vmatpush1.bf16.msra.mxu0 0
      %814 = vmatprep.subr.bf16.mxu0 0
      %815 = vmatpush1.bf16.msra.mxu0 0
      %816 = vmatprep.subr.bf16.mxu0 0
      %817 = vmatpush1.bf16.msra.mxu0 0
      %818 = vmatprep.subr.bf16.mxu0 0
      %819 = vmatpush1.bf16.msra.mxu0 0
      %820 = vmatprep.subr.bf16.mxu0 0
      %821 = vmatpush1.bf16.msra.mxu0 0
      %822 = vmatprep.subr.bf16.mxu0 0
      %823 = vmatpush1.bf16.msra.mxu0 0
      %824 = vmatprep.mubr.bf16.mxu0 0
      %825 = vmatmul.mubr.bf16.gmra.mrb[0].mxu0 %v790
      %v826 = vpop.f32.mrb[0].mxu0
      %v827 = vadd.f32 0.0, %v826
      %v828 = vpop.f32.mrb[0].mxu0
      %v829 = vadd.f32 0.0, %v828
      %v830 = vpop.f32.mrb[0].mxu0
      %v831 = vpop.f32.mrb[0].mxu0
      %832 = vdwg.mxu0
      %v833 = vadd.f32 %v742, %v827
      %v834 = vadd.f32 %v744, %v829
      %s835 = sld [smem:[#allocation2]]
      %v836 = vstv %s835
      %v837 = vadd.f32 %v833, %v836
      %v838 = vadd.f32 %v834, %v836
      %v839 = vxor.u32 %v837, 2147483648
      %v840 = vxor.u32 %v838, 2147483648
      %v841 = vmul.f32 %v839, 1.442695
      %v842 = vpow.pop %v841
      %v843 = vmul.f32 %v840, 1.442695
      %v844 = vpow.pop %v843
      %v845 = vadd.f32 %v842, 1.0
      %v846 = vadd.f32 %v844, 1.0
      %v847 = vrcp.pop %v845
      %v848 = vmul.f32 1.0, %v847
      %v849 = vrcp.pop %v846
      %v850 = vmul.f32 1.0, %v849
      %v851 = vsub.f32 1.0, %v848
      %v852 = vsub.f32 1.0, %v850
      %v855 = vcombine.low %v848, %v850
      %v857 = vunpack.c.l.s4 1966171168
      %v858 = vunpack.c.0.s8 %v857
      %v859 = vlaneseq
      %v860 = vshrl.u32 %v859, 7
      %v861 = vsub.s32 %v858, %v860
      %v862 = vrot.slane %v855, %v861
      %v864 = vunpack.c.l.s4 1966171168
      %v865 = vunpack.c.0.s8 %v864
      %v866 = vlaneseq
      %v867 = vshrl.u32 %v866, 7
      %v868 = vsub.s32 %v865, %v867
      %v869 = vrot.slane %v862, %v868
      %v871 = vlaneseq
      %vm872 = vcmp.ge.s32.totalorder %v871, 0
      %vm873 = vcmp.lt.s32.totalorder %v871, 256
      %vm874 = vmand %vm872, %vm873
      %875 = vst.msk [vmem:[%s490] sm:$0x3] %vm874, %v869
      %p876 = scmp.eq.s32.totalorder %s28, 0
      // Predicated region
      $region49: #{mm_block5_pallas.2} parent=47 // pred_check
        %p877 = pneg %p876
      $region50: #{mm_block5_pallas.2} parent=47 // pred_check_branch
        %879 = sbr.rel (%p877) target = $region52
      $region51: #{mm_block5_pallas.2} parent=47 // pred_region
        %vm880 = vcmask 7168
        %881 = vst.msk [vmem:[%s496] sm:$0xff] %vm880, 0.0
        %882 = vst.msk [vmem:[%s496 + $0x8] sm:$0xff] %vm880, 0.0
        %883 = vst.msk [vmem:[%s496 + $0x10] sm:$0xff] %vm880, 0.0
        %884 = vst.msk [vmem:[%s496 + $0x18] sm:$0xff] %vm880, 0.0
        %885 = vst.msk [vmem:[%s496 + $0x20] sm:$0xff] %vm880, 0.0
        %886 = vst.msk [vmem:[%s496 + $0x28] sm:$0xff] %vm880, 0.0
        %887 = vst.msk [vmem:[%s496 + $0x30] sm:$0xff] %vm880, 0.0
        %888 = vst.msk [vmem:[%s496 + $0x38] sm:$0xff] %vm880, 0.0
        %889 = vst.msk [vmem:[%s496 + $0x40] sm:$0xff] %vm880, 0.0
        %890 = vst.msk [vmem:[%s496 + $0x48] sm:$0xff] %vm880, 0.0
        %891 = vst.msk [vmem:[%s496 + $0x50] sm:$0xff] %vm880, 0.0
        %892 = vst.msk [vmem:[%s496 + $0x58] sm:$0xff] %vm880, 0.0
        %893 = vst.msk [vmem:[%s496 + $0x60] sm:$0xff] %vm880, 0.0
        %894 = vst.msk [vmem:[%s496 + $0x68] sm:$0xff] %vm880, 0.0
        %895 = vst.msk [vmem:[%s496 + $0x70] sm:$0xff] %vm880, 0.0
        %896 = vst.msk [vmem:[%s496 + $0x78] sm:$0xff] %vm880, 0.0
        %897 = vst.msk [vmem:[%s501] sm:$0xff] %vm880, 0.0
        %898 = vst.msk [vmem:[%s501 + $0x8] sm:$0xff] %vm880, 0.0
        %899 = vst.msk [vmem:[%s501 + $0x10] sm:$0xff] %vm880, 0.0
        %900 = vst.msk [vmem:[%s501 + $0x18] sm:$0xff] %vm880, 0.0
        %901 = vst.msk [vmem:[%s501 + $0x20] sm:$0xff] %vm880, 0.0
        %902 = vst.msk [vmem:[%s501 + $0x28] sm:$0xff] %vm880, 0.0
        %903 = vst.msk [vmem:[%s501 + $0x30] sm:$0xff] %vm880, 0.0
        %904 = vst.msk [vmem:[%s501 + $0x38] sm:$0xff] %vm880, 0.0
        %905 = vst.msk [vmem:[%s506] sm:$0xff] %vm880, 0.0
        %906 = vst.msk [vmem:[%s506 + $0x8] sm:$0xff] %vm880, 0.0
        %907 = vst.msk [vmem:[%s506 + $0x10] sm:$0xff] %vm880, 0.0
        %908 = vst.msk [vmem:[%s506 + $0x18] sm:$0xff] %vm880, 0.0
        %909 = vst.msk [vmem:[%s506 + $0x20] sm:$0xff] %vm880, 0.0
        %910 = vst.msk [vmem:[%s506 + $0x28] sm:$0xff] %vm880, 0.0
        %911 = vst.msk [vmem:[%s506 + $0x30] sm:$0xff] %vm880, 0.0
        %912 = vst.msk [vmem:[%s506 + $0x38] sm:$0xff] %vm880, 0.0
      $region52: #{mm_block5_pallas.2} parent=47 // pred_fallthru
        _
      %v913 = vld [vmem:[%s496] sm:$0xff]
      %v914 = vld [vmem:[%s496 + $0x8] sm:$0xff]
      %v915 = vld [vmem:[%s496 + $0x10] sm:$0xff]
      %v916 = vld [vmem:[%s496 + $0x18] sm:$0xff]
      %v917 = vld [vmem:[%s496 + $0x20] sm:$0xff]
      %v918 = vld [vmem:[%s496 + $0x28] sm:$0xff]
      %v919 = vld [vmem:[%s496 + $0x30] sm:$0xff]
      %v920 = vld [vmem:[%s496 + $0x38] sm:$0xff]
      %v921 = vld [vmem:[%s496 + $0x40] sm:$0xff]
      %v922 = vld [vmem:[%s496 + $0x48] sm:$0xff]
      %v923 = vld [vmem:[%s496 + $0x50] sm:$0xff]
      %v924 = vld [vmem:[%s496 + $0x58] sm:$0xff]
      %v925 = vld [vmem:[%s496 + $0x60] sm:$0xff]
      %v926 = vld [vmem:[%s496 + $0x68] sm:$0xff]
      %v927 = vld [vmem:[%s496 + $0x70] sm:$0xff]
      %v928 = vld [vmem:[%s496 + $0x78] sm:$0xff]
      %v929 = vunpack.c.l.bf16 %v508
      %v930 = vunpack.c.h.bf16 %v508
      %v931 = vunpack.c.l.bf16 %v509
      %v932 = vunpack.c.h.bf16 %v509
      %v933 = vunpack.c.l.bf16 %v510
      %v934 = vunpack.c.h.bf16 %v510
      %v935 = vunpack.c.l.bf16 %v511
      %v936 = vunpack.c.h.bf16 %v511
      %v937 = vunpack.c.l.bf16 %v512
      %v938 = vunpack.c.h.bf16 %v512
      %v939 = vunpack.c.l.bf16 %v513
      %v940 = vunpack.c.h.bf16 %v513
      %v941 = vunpack.c.l.bf16 %v514
      %v942 = vunpack.c.h.bf16 %v514
      %v943 = vunpack.c.l.bf16 %v515
      %v944 = vunpack.c.h.bf16 %v515
      %v945 = vunpack.c.l.bf16 %v516
      %v946 = vunpack.c.h.bf16 %v516
      %v947 = vunpack.c.l.bf16 %v517
      %v948 = vunpack.c.h.bf16 %v517
      %v949 = vunpack.c.l.bf16 %v518
      %v950 = vunpack.c.h.bf16 %v518
      %v951 = vunpack.c.l.bf16 %v519
      %v952 = vunpack.c.h.bf16 %v519
      %v953 = vunpack.c.l.bf16 %v520
      %v954 = vunpack.c.h.bf16 %v520
      %v955 = vunpack.c.l.bf16 %v521
      %v956 = vunpack.c.h.bf16 %v521
      %v957 = vunpack.c.l.bf16 %v522
      %v958 = vunpack.c.h.bf16 %v522
      %v959 = vunpack.c.l.bf16 %v523
      %v960 = vunpack.c.h.bf16 %v523
      %v961 = vlaneseq
      %v962 = vshrl.u32 %v961, 7
      %v963 = vsub.s32 0, %v962
      %v964 = vrot.slane %v848, %v963
      %v965 = vlaneseq
      %v966 = vshrl.u32 %v965, 7
      %v967 = vsub.s32 0, %v966
      %v968 = vrot.slane %v850, %v967
      %v969 = vmul.f32 %v929, %v964
      %v970 = vmul.f32 %v930, %v968
      %v971 = vmul.f32 %v931, %v964
      %v972 = vmul.f32 %v932, %v968
      %v973 = vmul.f32 %v933, %v964
      %v974 = vmul.f32 %v934, %v968
      %v975 = vmul.f32 %v935, %v964
      %v976 = vmul.f32 %v936, %v968
      %v977 = vmul.f32 %v937, %v964
      %v978 = vmul.f32 %v938, %v968
      %v979 = vmul.f32 %v939, %v964
      %v980 = vmul.f32 %v940, %v968
      %v981 = vmul.f32 %v941, %v964
      %v982 = vmul.f32 %v942, %v968
      %v983 = vmul.f32 %v943, %v964
      %v984 = vmul.f32 %v944, %v968
      %v985 = vmul.f32 %v945, %v964
      %v986 = vmul.f32 %v946, %v968
      %v987 = vmul.f32 %v947, %v964
      %v988 = vmul.f32 %v948, %v968
      %v989 = vmul.f32 %v949, %v964
      %v990 = vmul.f32 %v950, %v968
      %v991 = vmul.f32 %v951, %v964
      %v992 = vmul.f32 %v952, %v968
      %v993 = vmul.f32 %v953, %v964
      %v994 = vmul.f32 %v954, %v968
      %v995 = vmul.f32 %v955, %v964
      %v996 = vmul.f32 %v956, %v968
      %v997 = vmul.f32 %v957, %v964
      %v998 = vmul.f32 %v958, %v968
      %v999 = vmul.f32 %v959, %v964
      %v1000 = vmul.f32 %v960, %v968
      %v1001 = vadd.f32 %v969, %v970
      %1002 = vadd.xlane.f32.xlu0 %v1001
      %v1003 = vpop.xlane.xlu0 %1002
      %v1004 = vadd.f32 %v971, %v972
      %1005 = vadd.xlane.f32.xlu0 %v1004
      %v1006 = vpop.xlane.xlu0 %1005
      %v1007 = vadd.f32 %v973, %v974
      %1008 = vadd.xlane.f32.xlu0 %v1007
      %v1009 = vpop.xlane.xlu0 %1008
      %v1010 = vadd.f32 %v975, %v976
      %1011 = vadd.xlane.f32.xlu0 %v1010
      %v1012 = vpop.xlane.xlu0 %1011
      %v1013 = vadd.f32 %v977, %v978
      %1014 = vadd.xlane.f32.xlu0 %v1013
      %v1015 = vpop.xlane.xlu0 %1014
      %v1016 = vadd.f32 %v979, %v980
      %1017 = vadd.xlane.f32.xlu0 %v1016
      %v1018 = vpop.xlane.xlu0 %1017
      %v1019 = vadd.f32 %v981, %v982
      %1020 = vadd.xlane.f32.xlu0 %v1019
      %v1021 = vpop.xlane.xlu0 %1020
      %v1022 = vadd.f32 %v983, %v984
      %1023 = vadd.xlane.f32.xlu0 %v1022
      %v1024 = vpop.xlane.xlu0 %1023
      %v1025 = vadd.f32 %v985, %v986
      %1026 = vadd.xlane.f32.xlu0 %v1025
      %v1027 = vpop.xlane.xlu0 %1026
      %v1028 = vadd.f32 %v987, %v988
      %1029 = vadd.xlane.f32.xlu0 %v1028
      %v1030 = vpop.xlane.xlu0 %1029
      %v1031 = vadd.f32 %v989, %v990
      %1032 = vadd.xlane.f32.xlu0 %v1031
      %v1033 = vpop.xlane.xlu0 %1032
      %v1034 = vadd.f32 %v991, %v992
      %1035 = vadd.xlane.f32.xlu0 %v1034
      %v1036 = vpop.xlane.xlu0 %1035
      %v1037 = vadd.f32 %v993, %v994
      %1038 = vadd.xlane.f32.xlu0 %v1037
      %v1039 = vpop.xlane.xlu0 %1038
      %v1040 = vadd.f32 %v995, %v996
      %1041 = vadd.xlane.f32.xlu0 %v1040
      %v1042 = vpop.xlane.xlu0 %1041
      %v1043 = vadd.f32 %v997, %v998
      %1044 = vadd.xlane.f32.xlu0 %v1043
      %v1045 = vpop.xlane.xlu0 %1044
      %v1046 = vadd.f32 %v999, %v1000
      %1047 = vadd.xlane.f32.xlu0 %v1046
      %v1048 = vpop.xlane.xlu0 %1047
      %v1049 = vadd.f32 %v913, %v1003
      %v1050 = vadd.f32 %v914, %v1006
      %v1051 = vadd.f32 %v915, %v1009
      %v1052 = vadd.f32 %v916, %v1012
      %v1053 = vadd.f32 %v917, %v1015
      %v1054 = vadd.f32 %v918, %v1018
      %v1055 = vadd.f32 %v919, %v1021
      %v1056 = vadd.f32 %v920, %v1024
      %v1057 = vadd.f32 %v921, %v1027
      %v1058 = vadd.f32 %v922, %v1030
      %v1059 = vadd.f32 %v923, %v1033
      %v1060 = vadd.f32 %v924, %v1036
      %v1061 = vadd.f32 %v925, %v1039
      %v1062 = vadd.f32 %v926, %v1042
      %v1063 = vadd.f32 %v927, %v1045
      %v1064 = vadd.f32 %v928, %v1048
      %vm1065 = vcmask 7168
      %1066 = vst.msk [vmem:[%s496] sm:$0xff] %vm1065, %v1049
      %1067 = vst.msk [vmem:[%s496 + $0x8] sm:$0xff] %vm1065, %v1050
      %1068 = vst.msk [vmem:[%s496 + $0x10] sm:$0xff] %vm1065, %v1051
      %1069 = vst.msk [vmem:[%s496 + $0x18] sm:$0xff] %vm1065, %v1052
      %1070 = vst.msk [vmem:[%s496 + $0x20] sm:$0xff] %vm1065, %v1053
      %1071 = vst.msk [vmem:[%s496 + $0x28] sm:$0xff] %vm1065, %v1054
      %1072 = vst.msk [vmem:[%s496 + $0x30] sm:$0xff] %vm1065, %v1055
      %1073 = vst.msk [vmem:[%s496 + $0x38] sm:$0xff] %vm1065, %v1056
      %1074 = vst.msk [vmem:[%s496 + $0x40] sm:$0xff] %vm1065, %v1057
      %1075 = vst.msk [vmem:[%s496 + $0x48] sm:$0xff] %vm1065, %v1058
      %1076 = vst.msk [vmem:[%s496 + $0x50] sm:$0xff] %vm1065, %v1059
      %1077 = vst.msk [vmem:[%s496 + $0x58] sm:$0xff] %vm1065, %v1060
      %1078 = vst.msk [vmem:[%s496 + $0x60] sm:$0xff] %vm1065, %v1061
      %1079 = vst.msk [vmem:[%s496 + $0x68] sm:$0xff] %vm1065, %v1062
      %1080 = vst.msk [vmem:[%s496 + $0x70] sm:$0xff] %vm1065, %v1063
      %1081 = vst.msk [vmem:[%s496 + $0x78] sm:$0xff] %vm1065, %v1064
      %v1082 = vld [vmem:[%s501] sm:$0xff]
      %v1083 = vld [vmem:[%s501 + $0x8] sm:$0xff]
      %v1084 = vld [vmem:[%s501 + $0x10] sm:$0xff]
      %v1085 = vld [vmem:[%s501 + $0x18] sm:$0xff]
      %v1086 = vld [vmem:[%s501 + $0x20] sm:$0xff]
      %v1087 = vld [vmem:[%s501 + $0x28] sm:$0xff]
      %v1088 = vld [vmem:[%s501 + $0x30] sm:$0xff]
      %v1089 = vld [vmem:[%s501 + $0x38] sm:$0xff]
      %v1090 = vunpack.c.l.bf16 %v524
      %v1091 = vunpack.c.h.bf16 %v524
      %v1092 = vunpack.c.l.bf16 %v525
      %v1093 = vunpack.c.h.bf16 %v525
      %v1094 = vunpack.c.l.bf16 %v526
      %v1095 = vunpack.c.h.bf16 %v526
      %v1096 = vunpack.c.l.bf16 %v527
      %v1097 = vunpack.c.h.bf16 %v527
      %v1098 = vunpack.c.l.bf16 %v528
      %v1099 = vunpack.c.h.bf16 %v528
      %v1100 = vunpack.c.l.bf16 %v529
      %v1101 = vunpack.c.h.bf16 %v529
      %v1102 = vunpack.c.l.bf16 %v530
      %v1103 = vunpack.c.h.bf16 %v530
      %v1104 = vunpack.c.l.bf16 %v531
      %v1105 = vunpack.c.h.bf16 %v531
      %v1106 = vlaneseq
      %v1107 = vshrl.u32 %v1106, 7
      %v1108 = vsub.s32 0, %v1107
      %v1109 = vrot.slane %v851, %v1108
      %v1110 = vlaneseq
      %v1111 = vshrl.u32 %v1110, 7
      %v1112 = vsub.s32 0, %v1111
      %v1113 = vrot.slane %v852, %v1112
      %v1114 = vmul.f32 %v1090, %v1109
      %v1115 = vmul.f32 %v1091, %v1113
      %v1116 = vmul.f32 %v1092, %v1109
      %v1117 = vmul.f32 %v1093, %v1113
      %v1118 = vmul.f32 %v1094, %v1109
      %v1119 = vmul.f32 %v1095, %v1113
      %v1120 = vmul.f32 %v1096, %v1109
      %v1121 = vmul.f32 %v1097, %v1113
      %v1122 = vmul.f32 %v1098, %v1109
      %v1123 = vmul.f32 %v1099, %v1113
      %v1124 = vmul.f32 %v1100, %v1109
      %v1125 = vmul.f32 %v1101, %v1113
      %v1126 = vmul.f32 %v1102, %v1109
      %v1127 = vmul.f32 %v1103, %v1113
      %v1128 = vmul.f32 %v1104, %v1109
      %v1129 = vmul.f32 %v1105, %v1113
      %v1130 = vadd.f32 %v1114, %v1115
      %1131 = vadd.xlane.f32.xlu0 %v1130
      %v1132 = vpop.xlane.xlu0 %1131
      %v1133 = vadd.f32 %v1116, %v1117
      %1134 = vadd.xlane.f32.xlu0 %v1133
      %v1135 = vpop.xlane.xlu0 %1134
      %v1136 = vadd.f32 %v1118, %v1119
      %1137 = vadd.xlane.f32.xlu0 %v1136
      %v1138 = vpop.xlane.xlu0 %1137
      %v1139 = vadd.f32 %v1120, %v1121
      %1140 = vadd.xlane.f32.xlu0 %v1139
      %v1141 = vpop.xlane.xlu0 %1140
      %v1142 = vadd.f32 %v1122, %v1123
      %1143 = vadd.xlane.f32.xlu0 %v1142
      %v1144 = vpop.xlane.xlu0 %1143
      %v1145 = vadd.f32 %v1124, %v1125
      %1146 = vadd.xlane.f32.xlu0 %v1145
      %v1147 = vpop.xlane.xlu0 %1146
      %v1148 = vadd.f32 %v1126, %v1127
      %1149 = vadd.xlane.f32.xlu0 %v1148
      %v1150 = vpop.xlane.xlu0 %1149
      %v1151 = vadd.f32 %v1128, %v1129
      %1152 = vadd.xlane.f32.xlu0 %v1151
      %v1153 = vpop.xlane.xlu0 %1152
      %v1154 = vadd.f32 %v1082, %v1132
      %v1155 = vadd.f32 %v1083, %v1135
      %v1156 = vadd.f32 %v1084, %v1138
      %v1157 = vadd.f32 %v1085, %v1141
      %v1158 = vadd.f32 %v1086, %v1144
      %v1159 = vadd.f32 %v1087, %v1147
      %v1160 = vadd.f32 %v1088, %v1150
      %v1161 = vadd.f32 %v1089, %v1153
      %1162 = vst.msk [vmem:[%s501] sm:$0xff] %vm1065, %v1154
      %1163 = vst.msk [vmem:[%s501 + $0x8] sm:$0xff] %vm1065, %v1155
      %1164 = vst.msk [vmem:[%s501 + $0x10] sm:$0xff] %vm1065, %v1156
      %1165 = vst.msk [vmem:[%s501 + $0x18] sm:$0xff] %vm1065, %v1157
      %1166 = vst.msk [vmem:[%s501 + $0x20] sm:$0xff] %vm1065, %v1158
      %1167 = vst.msk [vmem:[%s501 + $0x28] sm:$0xff] %vm1065, %v1159
      %1168 = vst.msk [vmem:[%s501 + $0x30] sm:$0xff] %vm1065, %v1160
      %1169 = vst.msk [vmem:[%s501 + $0x38] sm:$0xff] %vm1065, %v1161
      %v1170 = vld [vmem:[%s506] sm:$0xff]
      %v1171 = vld [vmem:[%s506 + $0x8] sm:$0xff]
      %v1172 = vld [vmem:[%s506 + $0x10] sm:$0xff]
      %v1173 = vld [vmem:[%s506 + $0x18] sm:$0xff]
      %v1174 = vld [vmem:[%s506 + $0x20] sm:$0xff]
      %v1175 = vld [vmem:[%s506 + $0x28] sm:$0xff]
      %v1176 = vld [vmem:[%s506 + $0x30] sm:$0xff]
      %v1177 = vld [vmem:[%s506 + $0x38] sm:$0xff]
      %v1178 = vunpack.c.l.bf16 %v532
      %v1179 = vunpack.c.h.bf16 %v532
      %v1180 = vunpack.c.l.bf16 %v533
      %v1181 = vunpack.c.h.bf16 %v533
      %v1182 = vunpack.c.l.bf16 %v534
      %v1183 = vunpack.c.h.bf16 %v534
      %v1184 = vunpack.c.l.bf16 %v535
      %v1185 = vunpack.c.h.bf16 %v535
      %v1186 = vunpack.c.l.bf16 %v536
      %v1187 = vunpack.c.h.bf16 %v536
      %v1188 = vunpack.c.l.bf16 %v537
      %v1189 = vunpack.c.h.bf16 %v537
      %v1190 = vunpack.c.l.bf16 %v538
      %v1191 = vunpack.c.h.bf16 %v538
      %v1192 = vunpack.c.l.bf16 %v539
      %v1193 = vunpack.c.h.bf16 %v539
      %v1194 = vmul.f32 %v1178, %v1109
      %v1195 = vmul.f32 %v1179, %v1113
      %v1196 = vmul.f32 %v1180, %v1109
      %v1197 = vmul.f32 %v1181, %v1113
      %v1198 = vmul.f32 %v1182, %v1109
      %v1199 = vmul.f32 %v1183, %v1113
      %v1200 = vmul.f32 %v1184, %v1109
      %v1201 = vmul.f32 %v1185, %v1113
      %v1202 = vmul.f32 %v1186, %v1109
      %v1203 = vmul.f32 %v1187, %v1113
      %v1204 = vmul.f32 %v1188, %v1109
      %v1205 = vmul.f32 %v1189, %v1113
      %v1206 = vmul.f32 %v1190, %v1109
      %v1207 = vmul.f32 %v1191, %v1113
      %v1208 = vmul.f32 %v1192, %v1109
      %v1209 = vmul.f32 %v1193, %v1113
      %v1210 = vadd.f32 %v1194, %v1195
      %1211 = vadd.xlane.f32.xlu0 %v1210
      %v1212 = vpop.xlane.xlu0 %1211
      %v1213 = vadd.f32 %v1196, %v1197
      %1214 = vadd.xlane.f32.xlu0 %v1213
      %v1215 = vpop.xlane.xlu0 %1214
      %v1216 = vadd.f32 %v1198, %v1199
      %1217 = vadd.xlane.f32.xlu0 %v1216
      %v1218 = vpop.xlane.xlu0 %1217
      %v1219 = vadd.f32 %v1200, %v1201
      %1220 = vadd.xlane.f32.xlu0 %v1219
      %v1221 = vpop.xlane.xlu0 %1220
      %v1222 = vadd.f32 %v1202, %v1203
      %1223 = vadd.xlane.f32.xlu0 %v1222
      %v1224 = vpop.xlane.xlu0 %1223
      %v1225 = vadd.f32 %v1204, %v1205
      %1226 = vadd.xlane.f32.xlu0 %v1225
      %v1227 = vpop.xlane.xlu0 %1226
      %v1228 = vadd.f32 %v1206, %v1207
      %1229 = vadd.xlane.f32.xlu0 %v1228
      %v1230 = vpop.xlane.xlu0 %1229
      %v1231 = vadd.f32 %v1208, %v1209
      %1232 = vadd.xlane.f32.xlu0 %v1231
      %v1233 = vpop.xlane.xlu0 %1232
      %v1234 = vadd.f32 %v1170, %v1212
      %v1235 = vadd.f32 %v1171, %v1215
      %v1236 = vadd.f32 %v1172, %v1218
      %v1237 = vadd.f32 %v1173, %v1221
      %v1238 = vadd.f32 %v1174, %v1224
      %v1239 = vadd.f32 %v1175, %v1227
      %v1240 = vadd.f32 %v1176, %v1230
      %v1241 = vadd.f32 %v1177, %v1233
      %1242 = vst.msk [vmem:[%s506] sm:$0xff] %vm1065, %v1234
      %1243 = vst.msk [vmem:[%s506 + $0x8] sm:$0xff] %vm1065, %v1235
      %1244 = vst.msk [vmem:[%s506 + $0x10] sm:$0xff] %vm1065, %v1236
      %1245 = vst.msk [vmem:[%s506 + $0x18] sm:$0xff] %vm1065, %v1237
      %1246 = vst.msk [vmem:[%s506 + $0x20] sm:$0xff] %vm1065, %v1238
      %1247 = vst.msk [vmem:[%s506 + $0x28] sm:$0xff] %vm1065, %v1239
      %1248 = vst.msk [vmem:[%s506 + $0x30] sm:$0xff] %vm1065, %v1240
      %1249 = vst.msk [vmem:[%s506 + $0x38] sm:$0xff] %vm1065, %v1241
      %s1250 = smul.u32 2, %s28
      %p1251 = scmp.lt.s32.totalorder %s27, 1
      %s1252 = scalar_select %p1251, %s27, 1
      %p1253 = scmp.lt.s32.totalorder %s1250, 1
      %s1254 = scalar_select %p1253, %s1250, 1
      %s1255 = smul.addr %s1252, 2
      %s1256 = sadd.s32 %s1254, %s1255
      %s1257 = scalar_lea.vmem %s7, %s1256
      %p1258 = scmp.lt.s32.totalorder %s27, 1
      %s1259 = scalar_select %p1258, %s27, 1
      %s1260 = smul.addr %s1259, 16
      %s1261 = smul.addr %s1260, 8
      %s1262 = scalar_lea.vmem %s8, %s1261
      %p1263 = scmp.lt.s32.totalorder %s27, 1
      %s1264 = scalar_select %p1263, %s27, 1
      %s1265 = smul.addr %s1264, 8
      %s1266 = smul.addr %s1265, 8
      %s1267 = scalar_lea.vmem %s9, %s1266
      %p1268 = scmp.lt.s32.totalorder %s27, 1
      %s1269 = scalar_select %p1268, %s27, 1
      %s1270 = smul.addr %s1269, 8
      %s1271 = smul.addr %s1270, 8
      %s1272 = scalar_lea.vmem %s10, %s1271
      // Predicated region
      $region53: #{mm_block5_pallas.2} parent=47 // pred_check
        %p1273 = pneg %p223
      $region54: #{mm_block5_pallas.2} parent=47 // pred_check_branch
        %1275 = sbr.rel (%p1273) target = $region56
      $region55: #{mm_block5_pallas.2} parent=47 // pred_region
        %s1276 = smul.u32 2, %s28
      $region56: #{mm_block5_pallas.2} parent=47 // pred_fallthru
        _
      // Predicated region
      $region57: #{mm_block5_pallas.2} parent=47 // pred_check
        %p1277 = pneg %p249
      $region58: #{mm_block5_pallas.2} parent=47 // pred_check_branch
        %1279 = sbr.rel (%p1277) target = $region60
      $region59: #{mm_block5_pallas.2} parent=47 // pred_region
        _
      $region60: #{mm_block5_pallas.2} parent=47 // pred_fallthru
        _
      // Predicated region
      $region61: #{mm_block5_pallas.2} parent=47 // pred_check
        %p1280 = pneg %p275
      $region62: #{mm_block5_pallas.2} parent=47 // pred_check_branch
        %1282 = sbr.rel (%p1280) target = $region64
      $region63: #{mm_block5_pallas.2} parent=47 // pred_region
        _
      $region64: #{mm_block5_pallas.2} parent=47 // pred_fallthru
        _
      // Predicated region
      $region65: #{mm_block5_pallas.2} parent=47 // pred_check
        %p1283 = pneg %p301
      $region66: #{mm_block5_pallas.2} parent=47 // pred_check_branch
        %1285 = sbr.rel (%p1283) target = $region68
      $region67: #{mm_block5_pallas.2} parent=47 // pred_region
        _
      $region68: #{mm_block5_pallas.2} parent=47 // pred_fallthru
        _
    $region48: #{mm_block5_pallas.2} parent=5 // pred_fallthru
      _
    %p1286 = scmp.le.s32.totalorder 2, %s18
    // Predicated region
    $region69: #{mm_block5_pallas.2} parent=5 // pred_check
      %p1287 = pneg %p1286
    $region70: #{mm_block5_pallas.2} parent=5 // pred_check_branch
      %1289 = sbr.rel (%p1287) target = $region72
    $region71: #{mm_block5_pallas.2} parent=5 // pred_region
      %s1290 = ssub.s32 %s18, 2
      // Predicated region
      $region73: #{mm_block5_pallas.2} parent=71 // pred_check
        %p1291 = pneg %p229
      $region74: #{mm_block5_pallas.2} parent=71 // pred_check_branch
        %1293 = sbr.rel (%p1291) target = $region76
      $region75: #{mm_block5_pallas.2} parent=71 // pred_region
        %s1294 = smul.u32 2, %s30
        %p1295 = scmp.lt.s32.totalorder %s29, 1
        %s1296 = scalar_select %p1295, %s29, 1
        %p1297 = scmp.lt.s32.totalorder %s1294, 1
        %s1298 = scalar_select %p1297, %s1294, 1
        %s1299 = smul.addr %s1296, 2
        %s1300 = sadd.s32 %s1298, %s1299
        %s1301 = scalar_lea.vmem %s7, %s1300
      $region76: #{mm_block5_pallas.2} parent=71 // pred_fallthru
        _
      // Predicated region
      $region77: #{mm_block5_pallas.2} parent=71 // pred_check
        %p1302 = pneg %p255
      $region78: #{mm_block5_pallas.2} parent=71 // pred_check_branch
        %1304 = sbr.rel (%p1302) target = $region80
      $region79: #{mm_block5_pallas.2} parent=71 // pred_region
        %p1305 = scmp.lt.s32.totalorder %s29, 1
        %s1306 = scalar_select %p1305, %s29, 1
        %s1307 = smul.addr %s1306, 16
        %s1308 = smul.addr %s1307, 8
        %s1309 = scalar_lea.vmem %s8, %s1308
      $region80: #{mm_block5_pallas.2} parent=71 // pred_fallthru
        _
      // Predicated region
      $region81: #{mm_block5_pallas.2} parent=71 // pred_check
        %p1310 = pneg %p281
      $region82: #{mm_block5_pallas.2} parent=71 // pred_check_branch
        %1312 = sbr.rel (%p1310) target = $region84
      $region83: #{mm_block5_pallas.2} parent=71 // pred_region
        %p1313 = scmp.lt.s32.totalorder %s29, 1
        %s1314 = scalar_select %p1313, %s29, 1
        %s1315 = smul.addr %s1314, 8
        %s1316 = smul.addr %s1315, 8
        %s1317 = scalar_lea.vmem %s9, %s1316
      $region84: #{mm_block5_pallas.2} parent=71 // pred_fallthru
        _
      // Predicated region
      $region85: #{mm_block5_pallas.2} parent=71 // pred_check
        %p1318 = pneg %p307
      $region86: #{mm_block5_pallas.2} parent=71 // pred_check_branch
        %1320 = sbr.rel (%p1318) target = $region88
      $region87: #{mm_block5_pallas.2} parent=71 // pred_region
        %p1321 = scmp.lt.s32.totalorder %s29, 1
        %s1322 = scalar_select %p1321, %s29, 1
        %s1323 = smul.addr %s1322, 8
        %s1324 = smul.addr %s1323, 8
        %s1325 = scalar_lea.vmem %s10, %s1324
      $region88: #{mm_block5_pallas.2} parent=71 // pred_fallthru
        _
    $region72: #{mm_block5_pallas.2} parent=5 // pred_fallthru
      _
  $region6: #{mm_block5_pallas.2} parent=0 // loop_footer
    %s22 = sadd.s32 1, %s18
  $region7: #{mm_block5_pallas.2} parent=0 // loop_footer_branch
    %17 = sbr.rel target = $region3
  $region8: #{mm_block5_pallas.2} parent=0 // loop_exit
    _

// kernel: mm_block5_pallas.3
$region0: #{mm_block5_pallas.3}
  #allocation0 [shape = 'u32[]', space=smem, size = 0x4, offset = 0x4, fixed_abs, tag = 'smem constant byte address 0x4 - core index']
  #allocation1 [shape = 'u32[144,128]{1,0:T(1,128)}', space=vmem, size = 0x12000, scoped, tag = 'internal scratch']
  %s0 = inlined_call_operand.vmem [shape: bf16[2,128,256], index: 0, kind: input, shape index: {}]
  %s1 = inlined_call_operand.vmem [shape: bf16[2,64,256], index: 1, kind: input, shape index: {}]
  %s2 = inlined_call_operand.vmem [shape: bf16[2,64,256], index: 2, kind: input, shape index: {}]
  %s3 = inlined_call_operand.vmem [shape: f32[2,1,256], index: 3, kind: input, shape index: {}]
  %s4 = inlined_call_operand.vmem [shape: f32[2,128,1], index: 4, kind: input, shape index: {}]
  %s5 = inlined_call_operand.vmem [shape: f32[2,64,1], index: 5, kind: input, shape index: {}]
  %s6 = inlined_call_operand.vmem [shape: f32[2,64,1], index: 6, kind: input, shape index: {}]
  %s7 = inlined_call_operand.vmem [shape: bf16[2,128,256], index: 7, kind: output, shape index: {}]
  %s8 = sld [smem:[#allocation0]]
  $region61: #{mm_block5_pallas.3} parent=0
    _
  %s10 = ssub.s32 1, %s8
  %s11 = scalar_select 0, %s10, %s8
  loop: start=0, step=1, limit=4
  $region2: #{mm_block5_pallas.3} parent=0 // loop_pre_header
    _
  $region3: #{mm_block5_pallas.3} parent=0 // loop_header
    %s13 = sphi 0, %s17
    %p14 = scmp.ge.s32.totalorder %s13, 4
    %s20 = sphi 0, %s32
    %s21 = sphi 0, %s28
    %s22 = sphi 0, %s20
    %s23 = sphi 0, %s21
    %s24 = sphi 0, %s22
    %s25 = sphi 0, %s23
    %s37 = sphi 0, %s39
    %s40 = sphi 0, %s37
    %s41 = sphi 0, %s40
    %s57 = sphi 0, %s41
    %s65 = sphi 0, %s67
    %s68 = sphi 0, %s65
    %s69 = sphi 0, %s68
    %s85 = sphi 0, %s69
    %s93 = sphi 0, %s95
    %s96 = sphi 0, %s93
    %s97 = sphi 0, %s96
    %s113 = sphi 0, %s97
    %s121 = sphi 0, %s123
    %s124 = sphi 0, %s121
    %s125 = sphi 0, %s124
    %s141 = sphi 0, %s125
    %s147 = sphi 0, %s149
    %s150 = sphi 0, %s147
    %s151 = sphi 0, %s150
    %s167 = sphi 0, %s151
    %s173 = sphi 0, %s175
    %s176 = sphi 0, %s173
    %s177 = sphi 0, %s176
    %s193 = sphi 0, %s177
    %s199 = sphi 0, %s201
    %s202 = sphi 0, %s199
    %s203 = sphi 0, %s202
    %s219 = sphi 0, %s203
    %s227 = sphi 0, %s229
    %s230 = sphi 0, %s227
    %s231 = sphi 0, %s230
    %s247 = sphi 0, %s231
  $region4: #{mm_block5_pallas.3} parent=0 // loop_header_branch
    %16 = sbr.rel (%p14) target = $region8
  $region5: #{mm_block5_pallas.3} parent=0 // loop_body
    %s18 = ssub.s32 %s13, 1
    %s19 = ssub.s32 %s13, 2
    %s26 = sadd.s32 1, %s21
    %p27 = scmp.ge.s32.totalorder %s26, 1
    %s28 = scalar_select %p27, 0, %s26
    %s29 = sadd.s32 1, %s20
    %s30 = scalar_select %p27, %s29, %s20
    %p31 = scmp.ge.s32.totalorder %s30, 2
    %s32 = scalar_select %p31, 0, %s30
    %s33 = ssub.s32 %s20, %s32
    %s34 = ssub.s32 %s21, %s28
    %s35 = sor.u32 %s33, %s34
    %p36 = scmp.eq.s32.totalorder %s35, 0
    %s38 = sadd.s32 %s37, 1
    %s39 = scalar_select %p36, %s37, %s38
    %p42 = pneg %p36
    %p43 = scmp.eq.s32.totalorder %s13, 1
    %p44 = por %p42, %p43
    %p45 = scmp.ne.s32.totalorder %s37, %s40
    %p46 = scmp.eq.s32.totalorder %s13, 0
    %p47 = por %p45, %p46
    %p48 = scmp.ne.s32.totalorder %s37, %s40
    %p49 = scmp.eq.s32.totalorder %s18, 1
    %p50 = por %p48, %p49
    %p51 = scmp.ne.s32.totalorder %s40, %s41
    %p52 = scmp.eq.s32.totalorder %s18, 0
    %p53 = por %p51, %p52
    %p54 = scmp.ne.s32.totalorder %s40, %s41
    %p55 = scmp.eq.s32.totalorder %s19, 1
    %p56 = por %p54, %p55
    %p58 = scmp.ne.s32.totalorder %s41, %s57
    %p59 = scmp.eq.s32.totalorder %s19, 0
    %p60 = por %p58, %p59
    %s61 = ssub.s32 %s20, %s32
    %s62 = ssub.s32 %s21, %s28
    %s63 = sor.u32 %s61, %s62
    %p64 = scmp.eq.s32.totalorder %s63, 0
    %s66 = sadd.s32 %s65, 1
    %s67 = scalar_select %p64, %s65, %s66
    %p70 = pneg %p64
    %p71 = scmp.eq.s32.totalorder %s13, 1
    %p72 = por %p70, %p71
    %p73 = scmp.ne.s32.totalorder %s65, %s68
    %p74 = scmp.eq.s32.totalorder %s13, 0
    %p75 = por %p73, %p74
    %p76 = scmp.ne.s32.totalorder %s65, %s68
    %p77 = scmp.eq.s32.totalorder %s18, 1
    %p78 = por %p76, %p77
    %p79 = scmp.ne.s32.totalorder %s68, %s69
    %p80 = scmp.eq.s32.totalorder %s18, 0
    %p81 = por %p79, %p80
    %p82 = scmp.ne.s32.totalorder %s68, %s69
    %p83 = scmp.eq.s32.totalorder %s19, 1
    %p84 = por %p82, %p83
    %p86 = scmp.ne.s32.totalorder %s69, %s85
    %p87 = scmp.eq.s32.totalorder %s19, 0
    %p88 = por %p86, %p87
    %s89 = ssub.s32 %s20, %s32
    %s90 = ssub.s32 %s21, %s28
    %s91 = sor.u32 %s89, %s90
    %p92 = scmp.eq.s32.totalorder %s91, 0
    %s94 = sadd.s32 %s93, 1
    %s95 = scalar_select %p92, %s93, %s94
    %p98 = pneg %p92
    %p99 = scmp.eq.s32.totalorder %s13, 1
    %p100 = por %p98, %p99
    %p101 = scmp.ne.s32.totalorder %s93, %s96
    %p102 = scmp.eq.s32.totalorder %s13, 0
    %p103 = por %p101, %p102
    %p104 = scmp.ne.s32.totalorder %s93, %s96
    %p105 = scmp.eq.s32.totalorder %s18, 1
    %p106 = por %p104, %p105
    %p107 = scmp.ne.s32.totalorder %s96, %s97
    %p108 = scmp.eq.s32.totalorder %s18, 0
    %p109 = por %p107, %p108
    %p110 = scmp.ne.s32.totalorder %s96, %s97
    %p111 = scmp.eq.s32.totalorder %s19, 1
    %p112 = por %p110, %p111
    %p114 = scmp.ne.s32.totalorder %s97, %s113
    %p115 = scmp.eq.s32.totalorder %s19, 0
    %p116 = por %p114, %p115
    %s117 = ssub.s32 %s20, %s32
    %s118 = ssub.s32 %s21, %s28
    %s119 = sor.u32 %s117, %s118
    %p120 = scmp.eq.s32.totalorder %s119, 0
    %s122 = sadd.s32 %s121, 1
    %s123 = scalar_select %p120, %s121, %s122
    %p126 = pneg %p120
    %p127 = scmp.eq.s32.totalorder %s13, 1
    %p128 = por %p126, %p127
    %p129 = scmp.ne.s32.totalorder %s121, %s124
    %p130 = scmp.eq.s32.totalorder %s13, 0
    %p131 = por %p129, %p130
    %p132 = scmp.ne.s32.totalorder %s121, %s124
    %p133 = scmp.eq.s32.totalorder %s18, 1
    %p134 = por %p132, %p133
    %p135 = scmp.ne.s32.totalorder %s124, %s125
    %p136 = scmp.eq.s32.totalorder %s18, 0
    %p137 = por %p135, %p136
    %p138 = scmp.ne.s32.totalorder %s124, %s125
    %p139 = scmp.eq.s32.totalorder %s19, 1
    %p140 = por %p138, %p139
    %p142 = scmp.ne.s32.totalorder %s125, %s141
    %p143 = scmp.eq.s32.totalorder %s19, 0
    %p144 = por %p142, %p143
    %s145 = ssub.s32 %s20, %s32
    %p146 = scmp.eq.s32.totalorder %s145, 0
    %s148 = sadd.s32 %s147, 1
    %s149 = scalar_select %p146, %s147, %s148
    %p152 = pneg %p146
    %p153 = scmp.eq.s32.totalorder %s13, 1
    %p154 = por %p152, %p153
    %p155 = scmp.ne.s32.totalorder %s147, %s150
    %p156 = scmp.eq.s32.totalorder %s13, 0
    %p157 = por %p155, %p156
    %p158 = scmp.ne.s32.totalorder %s147, %s150
    %p159 = scmp.eq.s32.totalorder %s18, 1
    %p160 = por %p158, %p159
    %p161 = scmp.ne.s32.totalorder %s150, %s151
    %p162 = scmp.eq.s32.totalorder %s18, 0
    %p163 = por %p161, %p162
    %p164 = scmp.ne.s32.totalorder %s150, %s151
    %p165 = scmp.eq.s32.totalorder %s19, 1
    %p166 = por %p164, %p165
    %p168 = scmp.ne.s32.totalorder %s151, %s167
    %p169 = scmp.eq.s32.totalorder %s19, 0
    %p170 = por %p168, %p169
    %s171 = ssub.s32 %s20, %s32
    %p172 = scmp.eq.s32.totalorder %s171, 0
    %s174 = sadd.s32 %s173, 1
    %s175 = scalar_select %p172, %s173, %s174
    %p178 = pneg %p172
    %p179 = scmp.eq.s32.totalorder %s13, 1
    %p180 = por %p178, %p179
    %p181 = scmp.ne.s32.totalorder %s173, %s176
    %p182 = scmp.eq.s32.totalorder %s13, 0
    %p183 = por %p181, %p182
    %p184 = scmp.ne.s32.totalorder %s173, %s176
    %p185 = scmp.eq.s32.totalorder %s18, 1
    %p186 = por %p184, %p185
    %p187 = scmp.ne.s32.totalorder %s176, %s177
    %p188 = scmp.eq.s32.totalorder %s18, 0
    %p189 = por %p187, %p188
    %p190 = scmp.ne.s32.totalorder %s176, %s177
    %p191 = scmp.eq.s32.totalorder %s19, 1
    %p192 = por %p190, %p191
    %p194 = scmp.ne.s32.totalorder %s177, %s193
    %p195 = scmp.eq.s32.totalorder %s19, 0
    %p196 = por %p194, %p195
    %s197 = ssub.s32 %s20, %s32
    %p198 = scmp.eq.s32.totalorder %s197, 0
    %s200 = sadd.s32 %s199, 1
    %s201 = scalar_select %p198, %s199, %s200
    %p204 = pneg %p198
    %p205 = scmp.eq.s32.totalorder %s13, 1
    %p206 = por %p204, %p205
    %p207 = scmp.ne.s32.totalorder %s199, %s202
    %p208 = scmp.eq.s32.totalorder %s13, 0
    %p209 = por %p207, %p208
    %p210 = scmp.ne.s32.totalorder %s199, %s202
    %p211 = scmp.eq.s32.totalorder %s18, 1
    %p212 = por %p210, %p211
    %p213 = scmp.ne.s32.totalorder %s202, %s203
    %p214 = scmp.eq.s32.totalorder %s18, 0
    %p215 = por %p213, %p214
    %p216 = scmp.ne.s32.totalorder %s202, %s203
    %p217 = scmp.eq.s32.totalorder %s19, 1
    %p218 = por %p216, %p217
    %p220 = scmp.ne.s32.totalorder %s203, %s219
    %p221 = scmp.eq.s32.totalorder %s19, 0
    %p222 = por %p220, %p221
    %s223 = ssub.s32 %s20, %s32
    %s224 = ssub.s32 %s21, %s28
    %s225 = sor.u32 %s223, %s224
    %p226 = scmp.eq.s32.totalorder %s225, 0
    %s228 = sadd.s32 %s227, 1
    %s229 = scalar_select %p226, %s227, %s228
    %p232 = pneg %p226
    %p233 = scmp.eq.s32.totalorder %s13, 1
    %p234 = por %p232, %p233
    %p235 = scmp.ne.s32.totalorder %s227, %s230
    %p236 = scmp.eq.s32.totalorder %s13, 0
    %p237 = por %p235, %p236
    %p238 = scmp.ne.s32.totalorder %s227, %s230
    %p239 = scmp.eq.s32.totalorder %s18, 1
    %p240 = por %p238, %p239
    %p241 = scmp.ne.s32.totalorder %s230, %s231
    %p242 = scmp.eq.s32.totalorder %s18, 0
    %p243 = por %p241, %p242
    %p244 = scmp.ne.s32.totalorder %s230, %s231
    %p245 = scmp.eq.s32.totalorder %s19, 1
    %p246 = por %p244, %p245
    %p248 = scmp.ne.s32.totalorder %s231, %s247
    %p249 = scmp.eq.s32.totalorder %s19, 0
    %p250 = por %p248, %p249
    %p251 = scmp.le.s32.totalorder 1, %s13
    %p252 = scmp.lt.s32.totalorder %s13, 3
    %p253 = pnand %p251, %p252
    %p254 = pneg %p253
    // Predicated region
    $region9: #{mm_block5_pallas.3} parent=5 // pred_check
      _
    $region10: #{mm_block5_pallas.3} parent=5 // pred_check_branch
      %256 = sbr.rel (%p253) target = $region12
    $region11: #{mm_block5_pallas.3} parent=5 // pred_region
      %s257 = ssub.s32 %s13, 1
    $region12: #{mm_block5_pallas.3} parent=5 // pred_fallthru
      _
    %p258 = scmp.lt.s32.totalorder %s13, 2
    // Predicated region
    $region13: #{mm_block5_pallas.3} parent=5 // pred_check
      %p259 = pneg %p258
    $region14: #{mm_block5_pallas.3} parent=5 // pred_check_branch
      %261 = sbr.rel (%p259) target = $region16
    $region15: #{mm_block5_pallas.3} parent=5 // pred_region
      // Predicated region
      $region17: #{mm_block5_pallas.3} parent=15 // pred_check
        %p262 = pneg %p47
      $region18: #{mm_block5_pallas.3} parent=15 // pred_check_branch
        %264 = sbr.rel (%p262) target = $region20
      $region19: #{mm_block5_pallas.3} parent=15 // pred_region
        %s265 = smul.u32 2, %s21
        %p266 = scmp.lt.s32.totalorder %s20, 1
        %s267 = scalar_select %p266, %s20, 1
        %p268 = scmp.lt.s32.totalorder %s265, 1
        %s269 = scalar_select %p268, %s265, 1
        %s270 = smul.addr %s267, 32
        %s271 = sadd.s32 %s269, %s270
        %s272 = smul.addr %s271, 4
        %s273 = scalar_lea.vmem %s0, %s272
        %s274 = smul.u32 2, %s21
      $region20: #{mm_block5_pallas.3} parent=15 // pred_fallthru
        _
      // Predicated region
      $region21: #{mm_block5_pallas.3} parent=15 // pred_check
        %p275 = pneg %p75
      $region22: #{mm_block5_pallas.3} parent=15 // pred_check_branch
        %277 = sbr.rel (%p275) target = $region24
      $region23: #{mm_block5_pallas.3} parent=15 // pred_region
        %s278 = smul.u32 2, %s21
        %p279 = scmp.lt.s32.totalorder %s20, 1
        %s280 = scalar_select %p279, %s20, 1
        %p281 = scmp.lt.s32.totalorder %s278, 1
        %s282 = scalar_select %p281, %s278, 1
        %s283 = smul.addr %s280, 16
        %s284 = sadd.s32 %s282, %s283
        %s285 = smul.addr %s284, 4
        %s286 = scalar_lea.vmem %s1, %s285
        %s287 = smul.u32 2, %s21
      $region24: #{mm_block5_pallas.3} parent=15 // pred_fallthru
        _
      // Predicated region
      $region25: #{mm_block5_pallas.3} parent=15 // pred_check
        %p288 = pneg %p103
      $region26: #{mm_block5_pallas.3} parent=15 // pred_check_branch
        %290 = sbr.rel (%p288) target = $region28
      $region27: #{mm_block5_pallas.3} parent=15 // pred_region
        %s291 = smul.u32 2, %s21
        %p292 = scmp.lt.s32.totalorder %s20, 1
        %s293 = scalar_select %p292, %s20, 1
        %p294 = scmp.lt.s32.totalorder %s291, 1
        %s295 = scalar_select %p294, %s291, 1
        %s296 = smul.addr %s293, 16
        %s297 = sadd.s32 %s295, %s296
        %s298 = smul.addr %s297, 4
        %s299 = scalar_lea.vmem %s2, %s298
        %s300 = smul.u32 2, %s21
      $region28: #{mm_block5_pallas.3} parent=15 // pred_fallthru
        _
      // Predicated region
      $region29: #{mm_block5_pallas.3} parent=15 // pred_check
        %p301 = pneg %p131
      $region30: #{mm_block5_pallas.3} parent=15 // pred_check_branch
        %303 = sbr.rel (%p301) target = $region32
      $region31: #{mm_block5_pallas.3} parent=15 // pred_region
        %s304 = smul.u32 2, %s21
        %p305 = scmp.lt.s32.totalorder %s20, 1
        %s306 = scalar_select %p305, %s20, 1
        %p307 = scmp.lt.s32.totalorder %s304, 1
        %s308 = scalar_select %p307, %s304, 1
        %s309 = smul.addr %s306, 2
        %s310 = sadd.s32 %s308, %s309
        %s311 = scalar_lea.vmem %s3, %s310
        %s312 = smul.u32 2, %s21
      $region32: #{mm_block5_pallas.3} parent=15 // pred_fallthru
        _
      // Predicated region
      $region33: #{mm_block5_pallas.3} parent=15 // pred_check
        %p313 = pneg %p157
      $region34: #{mm_block5_pallas.3} parent=15 // pred_check_branch
        %315 = sbr.rel (%p313) target = $region36
      $region35: #{mm_block5_pallas.3} parent=15 // pred_region
        %p316 = scmp.lt.s32.totalorder %s20, 1
        %s317 = scalar_select %p316, %s20, 1
        %s318 = smul.addr %s317, 16
        %s319 = smul.addr %s318, 8
        %s320 = scalar_lea.vmem %s4, %s319
      $region36: #{mm_block5_pallas.3} parent=15 // pred_fallthru
        _
      // Predicated region
      $region37: #{mm_block5_pallas.3} parent=15 // pred_check
        %p321 = pneg %p183
      $region38: #{mm_block5_pallas.3} parent=15 // pred_check_branch
        %323 = sbr.rel (%p321) target = $region40
      $region39: #{mm_block5_pallas.3} parent=15 // pred_region
        %p324 = scmp.lt.s32.totalorder %s20, 1
        %s325 = scalar_select %p324, %s20, 1
        %s326 = smul.addr %s325, 8
        %s327 = smul.addr %s326, 8
        %s328 = scalar_lea.vmem %s5, %s327
      $region40: #{mm_block5_pallas.3} parent=15 // pred_fallthru
        _
      // Predicated region
      $region41: #{mm_block5_pallas.3} parent=15 // pred_check
        %p329 = pneg %p209
      $region42: #{mm_block5_pallas.3} parent=15 // pred_check_branch
        %331 = sbr.rel (%p329) target = $region44
      $region43: #{mm_block5_pallas.3} parent=15 // pred_region
        %p332 = scmp.lt.s32.totalorder %s20, 1
        %s333 = scalar_select %p332, %s20, 1
        %s334 = smul.addr %s333, 8
        %s335 = smul.addr %s334, 8
        %s336 = scalar_lea.vmem %s6, %s335
      $region44: #{mm_block5_pallas.3} parent=15 // pred_fallthru
        _
    $region16: #{mm_block5_pallas.3} parent=5 // pred_fallthru
      _
    %p337 = scmp.le.s32.totalorder 1, %s13
    %p338 = scmp.lt.s32.totalorder %s13, 3
    %p339 = pnand %p337, %p338
    %p340 = pneg %p339
    // Predicated region
    $region45: #{mm_block5_pallas.3} parent=5 // pred_check
      _
    $region46: #{mm_block5_pallas.3} parent=5 // pred_check_branch
      %342 = sbr.rel (%p339) target = $region48
    $region47: #{mm_block5_pallas.3} parent=5 // pred_region
      %s343 = ssub.s32 %s13, 1
      %s344 = smul.u32 2, %s23
      %p345 = scmp.lt.s32.totalorder %s22, 1
      %s346 = scalar_select %p345, %s22, 1
      %p347 = scmp.lt.s32.totalorder %s344, 1
      %s348 = scalar_select %p347, %s344, 1
      %s349 = smul.addr %s346, 32
      %s350 = sadd.s32 %s348, %s349
      %s351 = smul.addr %s350, 4
      %s352 = scalar_lea.vmem %s0, %s351
      %p353 = pneg %p53
      %p354 = pneg %p50
      %s355 = smul.u32 2, %s23
      %p356 = scmp.lt.s32.totalorder %s22, 1
      %s357 = scalar_select %p356, %s22, 1
      %p358 = scmp.lt.s32.totalorder %s355, 1
      %s359 = scalar_select %p358, %s355, 1
      %s360 = smul.addr %s357, 16
      %s361 = sadd.s32 %s359, %s360
      %s362 = smul.addr %s361, 4
      %s363 = scalar_lea.vmem %s1, %s362
      %p364 = pneg %p81
      %p365 = pneg %p78
      %s366 = smul.u32 2, %s23
      %p367 = scmp.lt.s32.totalorder %s22, 1
      %s368 = scalar_select %p367, %s22, 1
      %p369 = scmp.lt.s32.totalorder %s366, 1
      %s370 = scalar_select %p369, %s366, 1
      %s371 = smul.addr %s368, 16
      %s372 = sadd.s32 %s370, %s371
      %s373 = smul.addr %s372, 4
      %s374 = scalar_lea.vmem %s2, %s373
      %p375 = pneg %p109
      %p376 = pneg %p106
      %s377 = smul.u32 2, %s23
      %p378 = scmp.lt.s32.totalorder %s22, 1
      %s379 = scalar_select %p378, %s22, 1
      %p380 = scmp.lt.s32.totalorder %s377, 1
      %s381 = scalar_select %p380, %s377, 1
      %s382 = smul.addr %s379, 2
      %s383 = sadd.s32 %s381, %s382
      %s384 = scalar_lea.vmem %s3, %s383
      %p385 = pneg %p137
      %p386 = pneg %p134
      %p387 = scmp.lt.s32.totalorder %s22, 1
      %s388 = scalar_select %p387, %s22, 1
      %s389 = smul.addr %s388, 16
      %s390 = smul.addr %s389, 8
      %s391 = scalar_lea.vmem %s4, %s390
      %p392 = pneg %p163
      %p393 = pneg %p160
      %p394 = scmp.lt.s32.totalorder %s22, 1
      %s395 = scalar_select %p394, %s22, 1
      %s396 = smul.addr %s395, 8
      %s397 = smul.addr %s396, 8
      %s398 = scalar_lea.vmem %s5, %s397
      %p399 = pneg %p189
      %p400 = pneg %p186
      %p401 = scmp.lt.s32.totalorder %s22, 1
      %s402 = scalar_select %p401, %s22, 1
      %s403 = smul.addr %s402, 8
      %s404 = smul.addr %s403, 8
      %s405 = scalar_lea.vmem %s6, %s404
      %p406 = pneg %p215
      %p407 = pneg %p212
      %p408 = pneg %p243
      %p409 = pneg %p240
      %s410 = smul.u32 2, %s23
      %p411 = scmp.lt.s32.totalorder %s22, 1
      %s412 = scalar_select %p411, %s22, 1
      %p413 = scmp.lt.s32.totalorder %s410, 1
      %s414 = scalar_select %p413, %s410, 1
      %s415 = smul.addr %s412, 32
      %s416 = sadd.s32 %s414, %s415
      %s417 = smul.addr %s416, 4
      %s418 = scalar_lea.vmem %s7, %s417
      %s419 = smul.u32 2, %s23
      %p420 = scmp.lt.s32.totalorder %s22, 1
      %s421 = scalar_select %p420, %s22, 1
      %p422 = scmp.lt.s32.totalorder %s419, 1
      %s423 = scalar_select %p422, %s419, 1
      %s424 = smul.addr %s421, 32
      %s425 = sadd.s32 %s423, %s424
      %s426 = smul.addr %s425, 4
      %s427 = scalar_lea.vmem %s0, %s426
      %s428 = smul.u32 2, %s23
      %s429 = smul.u32 2, %s23
      %p430 = scmp.lt.s32.totalorder %s22, 1
      %s431 = scalar_select %p430, %s22, 1
      %p432 = scmp.lt.s32.totalorder %s429, 1
      %s433 = scalar_select %p432, %s429, 1
      %s434 = smul.addr %s431, 16
      %s435 = sadd.s32 %s433, %s434
      %s436 = smul.addr %s435, 4
      %s437 = scalar_lea.vmem %s1, %s436
      %s438 = smul.u32 2, %s23
      %s439 = smul.u32 2, %s23
      %p440 = scmp.lt.s32.totalorder %s22, 1
      %s441 = scalar_select %p440, %s22, 1
      %p442 = scmp.lt.s32.totalorder %s439, 1
      %s443 = scalar_select %p442, %s439, 1
      %s444 = smul.addr %s441, 16
      %s445 = sadd.s32 %s443, %s444
      %s446 = smul.addr %s445, 4
      %s447 = scalar_lea.vmem %s2, %s446
      %s448 = smul.u32 2, %s23
      %s449 = smul.u32 2, %s23
      %p450 = scmp.lt.s32.totalorder %s22, 1
      %s451 = scalar_select %p450, %s22, 1
      %p452 = scmp.lt.s32.totalorder %s449, 1
      %s453 = scalar_select %p452, %s449, 1
      %s454 = smul.addr %s451, 2
      %s455 = sadd.s32 %s453, %s454
      %s456 = scalar_lea.vmem %s3, %s455
      %s457 = smul.u32 2, %s23
      %p458 = scmp.lt.s32.totalorder %s22, 1
      %s459 = scalar_select %p458, %s22, 1
      %s460 = smul.addr %s459, 16
      %s461 = smul.addr %s460, 8
      %s462 = scalar_lea.vmem %s4, %s461
      %p463 = scmp.lt.s32.totalorder %s22, 1
      %s464 = scalar_select %p463, %s22, 1
      %s465 = smul.addr %s464, 8
      %s466 = smul.addr %s465, 8
      %s467 = scalar_lea.vmem %s5, %s466
      %p468 = scmp.lt.s32.totalorder %s22, 1
      %s469 = scalar_select %p468, %s22, 1
      %s470 = smul.addr %s469, 8
      %s471 = smul.addr %s470, 8
      %s472 = scalar_lea.vmem %s6, %s471
      %s473 = smul.u32 2, %s23
      %p474 = scmp.lt.s32.totalorder %s22, 1
      %s475 = scalar_select %p474, %s22, 1
      %p476 = scmp.lt.s32.totalorder %s473, 1
      %s477 = scalar_select %p476, %s473, 1
      %s478 = smul.addr %s475, 32
      %s479 = sadd.s32 %s477, %s478
      %s480 = smul.addr %s479, 4
      %s481 = scalar_lea.vmem %s7, %s480
      %s482 = smul.u32 2, %s23
      %v483 = vld [vmem:[%s456] sm:$0x3]
      %v484 = vsub.f32 1.0, %v483
      %v485 = vld [vmem:[%s462] sm:$0xff]
      %v486 = vld [vmem:[%s462 + $0x8] sm:$0xff]
      %v487 = vld [vmem:[%s462 + $0x10] sm:$0xff]
      %v488 = vld [vmem:[%s462 + $0x18] sm:$0xff]
      %v489 = vld [vmem:[%s462 + $0x20] sm:$0xff]
      %v490 = vld [vmem:[%s462 + $0x28] sm:$0xff]
      %v491 = vld [vmem:[%s462 + $0x30] sm:$0xff]
      %v492 = vld [vmem:[%s462 + $0x38] sm:$0xff]
      %v493 = vld [vmem:[%s427] sm:$0xff]
      %v494 = vld [vmem:[%s427 + $0x8] sm:$0xff]
      %v495 = vld [vmem:[%s427 + $0x10] sm:$0xff]
      %v496 = vld [vmem:[%s427 + $0x18] sm:$0xff]
      %v497 = vld [vmem:[%s427 + $0x20] sm:$0xff]
      %v498 = vld [vmem:[%s427 + $0x28] sm:$0xff]
      %v499 = vld [vmem:[%s427 + $0x30] sm:$0xff]
      %v500 = vld [vmem:[%s427 + $0x38] sm:$0xff]
      %v501 = vunpack.c.l.bf16 %v493
      %v502 = vunpack.c.h.bf16 %v493
      %v503 = vunpack.c.l.bf16 %v494
      %v504 = vunpack.c.h.bf16 %v494
      %v505 = vunpack.c.l.bf16 %v495
      %v506 = vunpack.c.h.bf16 %v495
      %v507 = vunpack.c.l.bf16 %v496
      %v508 = vunpack.c.h.bf16 %v496
      %v509 = vunpack.c.l.bf16 %v497
      %v510 = vunpack.c.h.bf16 %v497
      %v511 = vunpack.c.l.bf16 %v498
      %v512 = vunpack.c.h.bf16 %v498
      %v513 = vunpack.c.l.bf16 %v499
      %v514 = vunpack.c.h.bf16 %v499
      %v515 = vunpack.c.l.bf16 %v500
      %v516 = vunpack.c.h.bf16 %v500
      %v518 = vlaneseq
      %v519 = vshrl.u32 %v518, 7
      %v520 = vsub.s32 0, %v519
      %v521 = vrot.slane %v483, %v520
      %v522 = vlaneseq
      %v523 = vshrl.u32 %v522, 7
      %v524 = vsub.s32 1, %v523
      %v525 = vrot.slane %v483, %v524
      %v528 = vmul.f32 %v501, %v521
      %v529 = vmul.f32 %v502, %v525
      %v530 = vmul.f32 %v503, %v521
      %v531 = vmul.f32 %v504, %v525
      %v532 = vmul.f32 %v505, %v521
      %v533 = vmul.f32 %v506, %v525
      %v534 = vmul.f32 %v507, %v521
      %v535 = vmul.f32 %v508, %v525
      %v536 = vmul.f32 %v509, %v521
      %v537 = vmul.f32 %v510, %v525
      %v538 = vmul.f32 %v511, %v521
      %v539 = vmul.f32 %v512, %v525
      %v540 = vmul.f32 %v513, %v521
      %v541 = vmul.f32 %v514, %v525
      %v542 = vmul.f32 %v515, %v521
      %v543 = vmul.f32 %v516, %v525
      %545 = vset.pattern.permute.xlu0 0
      %546 = vperm.xlu0 %545, %v485
      %v547 = vpop.permute.xlu0 %546
      %550 = vset.pattern.permute.xlu0 0
      %551 = vperm.xlu0 %550, %v486
      %v552 = vpop.permute.xlu0 %551
      %555 = vset.pattern.permute.xlu0 0
      %556 = vperm.xlu0 %555, %v487
      %v557 = vpop.permute.xlu0 %556
      %560 = vset.pattern.permute.xlu0 0
      %561 = vperm.xlu0 %560, %v488
      %v562 = vpop.permute.xlu0 %561
      %565 = vset.pattern.permute.xlu0 0
      %566 = vperm.xlu0 %565, %v489
      %v567 = vpop.permute.xlu0 %566
      %570 = vset.pattern.permute.xlu0 0
      %571 = vperm.xlu0 %570, %v490
      %v572 = vpop.permute.xlu0 %571
      %575 = vset.pattern.permute.xlu0 0
      %576 = vperm.xlu0 %575, %v491
      %v577 = vpop.permute.xlu0 %576
      %580 = vset.pattern.permute.xlu0 0
      %581 = vperm.xlu0 %580, %v492
      %v582 = vpop.permute.xlu0 %581
      %v584 = vmul.f32 %v547, %v528
      %v585 = vmul.f32 %v547, %v529
      %v586 = vmul.f32 %v552, %v530
      %v587 = vmul.f32 %v552, %v531
      %v588 = vmul.f32 %v557, %v532
      %v589 = vmul.f32 %v557, %v533
      %v590 = vmul.f32 %v562, %v534
      %v591 = vmul.f32 %v562, %v535
      %v592 = vmul.f32 %v567, %v536
      %v593 = vmul.f32 %v567, %v537
      %v594 = vmul.f32 %v572, %v538
      %v595 = vmul.f32 %v572, %v539
      %v596 = vmul.f32 %v577, %v540
      %v597 = vmul.f32 %v577, %v541
      %v598 = vmul.f32 %v582, %v542
      %v599 = vmul.f32 %v582, %v543
      %v600 = vld [vmem:[%s467] sm:$0xff]
      %v601 = vld [vmem:[%s467 + $0x8] sm:$0xff]
      %v602 = vld [vmem:[%s467 + $0x10] sm:$0xff]
      %v603 = vld [vmem:[%s467 + $0x18] sm:$0xff]
      %v604 = vld [vmem:[%s467 + $0x20] sm:$0xff]
      %v605 = vld [vmem:[%s467 + $0x28] sm:$0xff]
      %v606 = vld [vmem:[%s467 + $0x30] sm:$0xff]
      %v607 = vld [vmem:[%s467 + $0x38] sm:$0xff]
      %v608 = vld [vmem:[%s437] sm:$0xff]
      %v609 = vld [vmem:[%s437 + $0x8] sm:$0xff]
      %v610 = vld [vmem:[%s437 + $0x10] sm:$0xff]
      %v611 = vld [vmem:[%s437 + $0x18] sm:$0xff]
      %v612 = vld [vmem:[%s437 + $0x20] sm:$0xff]
      %v613 = vld [vmem:[%s437 + $0x28] sm:$0xff]
      %v614 = vld [vmem:[%s437 + $0x30] sm:$0xff]
      %v615 = vld [vmem:[%s437 + $0x38] sm:$0xff]
      %v616 = vunpack.c.l.bf16 %v608
      %v617 = vunpack.c.h.bf16 %v608
      %v618 = vunpack.c.l.bf16 %v609
      %v619 = vunpack.c.h.bf16 %v609
      %v620 = vunpack.c.l.bf16 %v610
      %v621 = vunpack.c.h.bf16 %v610
      %v622 = vunpack.c.l.bf16 %v611
      %v623 = vunpack.c.h.bf16 %v611
      %v624 = vunpack.c.l.bf16 %v612
      %v625 = vunpack.c.h.bf16 %v612
      %v626 = vunpack.c.l.bf16 %v613
      %v627 = vunpack.c.h.bf16 %v613
      %v628 = vunpack.c.l.bf16 %v614
      %v629 = vunpack.c.h.bf16 %v614
      %v630 = vunpack.c.l.bf16 %v615
      %v631 = vunpack.c.h.bf16 %v615
      %v633 = vlaneseq
      %v634 = vshrl.u32 %v633, 7
      %v635 = vsub.s32 0, %v634
      %v636 = vrot.slane %v484, %v635
      %v637 = vlaneseq
      %v638 = vshrl.u32 %v637, 7
      %v639 = vsub.s32 1, %v638
      %v640 = vrot.slane %v484, %v639
      %v643 = vmul.f32 %v616, %v636
      %v644 = vmul.f32 %v617, %v640
      %v645 = vmul.f32 %v618, %v636
      %v646 = vmul.f32 %v619, %v640
      %v647 = vmul.f32 %v620, %v636
      %v648 = vmul.f32 %v621, %v640
      %v649 = vmul.f32 %v622, %v636
      %v650 = vmul.f32 %v623, %v640
      %v651 = vmul.f32 %v624, %v636
      %v652 = vmul.f32 %v625, %v640
      %v653 = vmul.f32 %v626, %v636
      %v654 = vmul.f32 %v627, %v640
      %v655 = vmul.f32 %v628, %v636
      %v656 = vmul.f32 %v629, %v640
      %v657 = vmul.f32 %v630, %v636
      %v658 = vmul.f32 %v631, %v640
      %660 = vset.pattern.permute.xlu0 0
      %661 = vperm.xlu0 %660, %v600
      %v662 = vpop.permute.xlu0 %661
      %665 = vset.pattern.permute.xlu0 0
      %666 = vperm.xlu0 %665, %v601
      %v667 = vpop.permute.xlu0 %666
      %670 = vset.pattern.permute.xlu0 0
      %671 = vperm.xlu0 %670, %v602
      %v672 = vpop.permute.xlu0 %671
      %675 = vset.pattern.permute.xlu0 0
      %676 = vperm.xlu0 %675, %v603
      %v677 = vpop.permute.xlu0 %676
      %680 = vset.pattern.permute.xlu0 0
      %681 = vperm.xlu0 %680, %v604
      %v682 = vpop.permute.xlu0 %681
      %685 = vset.pattern.permute.xlu0 0
      %686 = vperm.xlu0 %685, %v605
      %v687 = vpop.permute.xlu0 %686
      %690 = vset.pattern.permute.xlu0 0
      %691 = vperm.xlu0 %690, %v606
      %v692 = vpop.permute.xlu0 %691
      %695 = vset.pattern.permute.xlu0 0
      %696 = vperm.xlu0 %695, %v607
      %v697 = vpop.permute.xlu0 %696
      %v699 = vmul.f32 %v662, %v643
      %v700 = vmul.f32 %v662, %v644
      %v701 = vmul.f32 %v667, %v645
      %v702 = vmul.f32 %v667, %v646
      %v703 = vmul.f32 %v672, %v647
      %v704 = vmul.f32 %v672, %v648
      %v705 = vmul.f32 %v677, %v649
      %v706 = vmul.f32 %v677, %v650
      %v707 = vmul.f32 %v682, %v651
      %v708 = vmul.f32 %v682, %v652
      %v709 = vmul.f32 %v687, %v653
      %v710 = vmul.f32 %v687, %v654
      %v711 = vmul.f32 %v692, %v655
      %v712 = vmul.f32 %v692, %v656
      %v713 = vmul.f32 %v697, %v657
      %v714 = vmul.f32 %v697, %v658
      %v715 = vadd.f32 %v584, %v699
      %v716 = vadd.f32 %v585, %v700
      %v717 = vadd.f32 %v586, %v701
      %v718 = vadd.f32 %v587, %v702
      %v719 = vadd.f32 %v588, %v703
      %v720 = vadd.f32 %v589, %v704
      %v721 = vadd.f32 %v590, %v705
      %v722 = vadd.f32 %v591, %v706
      %v723 = vadd.f32 %v592, %v707
      %v724 = vadd.f32 %v593, %v708
      %v725 = vadd.f32 %v594, %v709
      %v726 = vadd.f32 %v595, %v710
      %v727 = vadd.f32 %v596, %v711
      %v728 = vadd.f32 %v597, %v712
      %v729 = vadd.f32 %v598, %v713
      %v730 = vadd.f32 %v599, %v714
      %v731 = vpack.c.bf16 %v717, %v715
      %v732 = vpack.c.bf16 %v718, %v716
      %v733 = vpack.c.bf16 %v721, %v719
      %v734 = vpack.c.bf16 %v722, %v720
      %v735 = vpack.c.bf16 %v725, %v723
      %v736 = vpack.c.bf16 %v726, %v724
      %v737 = vpack.c.bf16 %v729, %v727
      %v738 = vpack.c.bf16 %v730, %v728
      %v747 = vunpack.c.l.b16 %v731
      %v748 = vunpack.c.l.b16 %v732
      %v749 = vunpack.c.h.b16 %v731
      %v750 = vunpack.c.h.b16 %v732
      %v751 = vunpack.c.l.b16 %v733
      %v752 = vunpack.c.l.b16 %v734
      %v753 = vunpack.c.h.b16 %v733
      %v754 = vunpack.c.h.b16 %v734
      %v755 = vunpack.c.l.b16 %v735
      %v756 = vunpack.c.l.b16 %v736
      %v757 = vunpack.c.h.b16 %v735
      %v758 = vunpack.c.h.b16 %v736
      %v759 = vunpack.c.l.b16 %v737
      %v760 = vunpack.c.l.b16 %v738
      %v761 = vunpack.c.h.b16 %v737
      %v762 = vunpack.c.h.b16 %v738
      %v763 = vpack.c.b16 %v748, %v747
      %v764 = vpack.c.b16 %v750, %v749
      %v765 = vpack.c.b16 %v752, %v751
      %v766 = vpack.c.b16 %v754, %v753
      %v767 = vpack.c.b16 %v756, %v755
      %v768 = vpack.c.b16 %v758, %v757
      %v769 = vpack.c.b16 %v760, %v759
      %v770 = vpack.c.b16 %v762, %v761
      %779 = vst [vmem:[%s481] sm:$0xff] %v763
      %780 = vst [vmem:[%s481 + $0x8] sm:$0xff] %v764
      %781 = vst [vmem:[%s481 + $0x10] sm:$0xff] %v765
      %782 = vst [vmem:[%s481 + $0x18] sm:$0xff] %v766
      %783 = vst [vmem:[%s481 + $0x20] sm:$0xff] %v767
      %784 = vst [vmem:[%s481 + $0x28] sm:$0xff] %v768
      %785 = vst [vmem:[%s481 + $0x30] sm:$0xff] %v769
      %786 = vst [vmem:[%s481 + $0x38] sm:$0xff] %v770
      %v787 = vld [vmem:[%s462 + $0x40] sm:$0xff]
      %v788 = vld [vmem:[%s462 + $0x48] sm:$0xff]
      %v789 = vld [vmem:[%s462 + $0x50] sm:$0xff]
      %v790 = vld [vmem:[%s462 + $0x58] sm:$0xff]
      %v791 = vld [vmem:[%s462 + $0x60] sm:$0xff]
      %v792 = vld [vmem:[%s462 + $0x68] sm:$0xff]
      %v793 = vld [vmem:[%s462 + $0x70] sm:$0xff]
      %v794 = vld [vmem:[%s462 + $0x78] sm:$0xff]
      %v795 = vld [vmem:[%s427 + $0x40] sm:$0xff]
      %v796 = vld [vmem:[%s427 + $0x48] sm:$0xff]
      %v797 = vld [vmem:[%s427 + $0x50] sm:$0xff]
      %v798 = vld [vmem:[%s427 + $0x58] sm:$0xff]
      %v799 = vld [vmem:[%s427 + $0x60] sm:$0xff]
      %v800 = vld [vmem:[%s427 + $0x68] sm:$0xff]
      %v801 = vld [vmem:[%s427 + $0x70] sm:$0xff]
      %v802 = vld [vmem:[%s427 + $0x78] sm:$0xff]
      %v803 = vunpack.c.l.bf16 %v795
      %v804 = vunpack.c.h.bf16 %v795
      %v805 = vunpack.c.l.bf16 %v796
      %v806 = vunpack.c.h.bf16 %v796
      %v807 = vunpack.c.l.bf16 %v797
      %v808 = vunpack.c.h.bf16 %v797
      %v809 = vunpack.c.l.bf16 %v798
      %v810 = vunpack.c.h.bf16 %v798
      %v811 = vunpack.c.l.bf16 %v799
      %v812 = vunpack.c.h.bf16 %v799
      %v813 = vunpack.c.l.bf16 %v800
      %v814 = vunpack.c.h.bf16 %v800
      %v815 = vunpack.c.l.bf16 %v801
      %v816 = vunpack.c.h.bf16 %v801
      %v817 = vunpack.c.l.bf16 %v802
      %v818 = vunpack.c.h.bf16 %v802
      %v819 = vmul.f32 %v803, %v521
      %v820 = vmul.f32 %v804, %v525
      %v821 = vmul.f32 %v805, %v521
      %v822 = vmul.f32 %v806, %v525
      %v823 = vmul.f32 %v807, %v521
      %v824 = vmul.f32 %v808, %v525
      %v825 = vmul.f32 %v809, %v521
      %v826 = vmul.f32 %v810, %v525
      %v827 = vmul.f32 %v811, %v521
      %v828 = vmul.f32 %v812, %v525
      %v829 = vmul.f32 %v813, %v521
      %v830 = vmul.f32 %v814, %v525
      %v831 = vmul.f32 %v815, %v521
      %v832 = vmul.f32 %v816, %v525
      %v833 = vmul.f32 %v817, %v521
      %v834 = vmul.f32 %v818, %v525
      %836 = vset.pattern.permute.xlu0 0
      %837 = vperm.xlu0 %836, %v787
      %v838 = vpop.permute.xlu0 %837
      %841 = vset.pattern.permute.xlu0 0
      %842 = vperm.xlu0 %841, %v788
      %v843 = vpop.permute.xlu0 %842
      %846 = vset.pattern.permute.xlu0 0
      %847 = vperm.xlu0 %846, %v789
      %v848 = vpop.permute.xlu0 %847
      %851 = vset.pattern.permute.xlu0 0
      %852 = vperm.xlu0 %851, %v790
      %v853 = vpop.permute.xlu0 %852
      %856 = vset.pattern.permute.xlu0 0
      %857 = vperm.xlu0 %856, %v791
      %v858 = vpop.permute.xlu0 %857
      %861 = vset.pattern.permute.xlu0 0
      %862 = vperm.xlu0 %861, %v792
      %v863 = vpop.permute.xlu0 %862
      %866 = vset.pattern.permute.xlu0 0
      %867 = vperm.xlu0 %866, %v793
      %v868 = vpop.permute.xlu0 %867
      %871 = vset.pattern.permute.xlu0 0
      %872 = vperm.xlu0 %871, %v794
      %v873 = vpop.permute.xlu0 %872
      %v875 = vmul.f32 %v838, %v819
      %v876 = vmul.f32 %v838, %v820
      %v877 = vmul.f32 %v843, %v821
      %v878 = vmul.f32 %v843, %v822
      %v879 = vmul.f32 %v848, %v823
      %v880 = vmul.f32 %v848, %v824
      %v881 = vmul.f32 %v853, %v825
      %v882 = vmul.f32 %v853, %v826
      %v883 = vmul.f32 %v858, %v827
      %v884 = vmul.f32 %v858, %v828
      %v885 = vmul.f32 %v863, %v829
      %v886 = vmul.f32 %v863, %v830
      %v887 = vmul.f32 %v868, %v831
      %v888 = vmul.f32 %v868, %v832
      %v889 = vmul.f32 %v873, %v833
      %v890 = vmul.f32 %v873, %v834
      %v891 = vld [vmem:[%s472] sm:$0xff]
      %v892 = vld [vmem:[%s472 + $0x8] sm:$0xff]
      %v893 = vld [vmem:[%s472 + $0x10] sm:$0xff]
      %v894 = vld [vmem:[%s472 + $0x18] sm:$0xff]
      %v895 = vld [vmem:[%s472 + $0x20] sm:$0xff]
      %v896 = vld [vmem:[%s472 + $0x28] sm:$0xff]
      %v897 = vld [vmem:[%s472 + $0x30] sm:$0xff]
      %v898 = vld [vmem:[%s472 + $0x38] sm:$0xff]
      %v899 = vld [vmem:[%s447] sm:$0xff]
      %v900 = vld [vmem:[%s447 + $0x8] sm:$0xff]
      %v901 = vld [vmem:[%s447 + $0x10] sm:$0xff]
      %v902 = vld [vmem:[%s447 + $0x18] sm:$0xff]
      %v903 = vld [vmem:[%s447 + $0x20] sm:$0xff]
      %v904 = vld [vmem:[%s447 + $0x28] sm:$0xff]
      %v905 = vld [vmem:[%s447 + $0x30] sm:$0xff]
      %v906 = vld [vmem:[%s447 + $0x38] sm:$0xff]
      %v907 = vunpack.c.l.bf16 %v899
      %v908 = vunpack.c.h.bf16 %v899
      %v909 = vunpack.c.l.bf16 %v900
      %v910 = vunpack.c.h.bf16 %v900
      %v911 = vunpack.c.l.bf16 %v901
      %v912 = vunpack.c.h.bf16 %v901
      %v913 = vunpack.c.l.bf16 %v902
      %v914 = vunpack.c.h.bf16 %v902
      %v915 = vunpack.c.l.bf16 %v903
      %v916 = vunpack.c.h.bf16 %v903
      %v917 = vunpack.c.l.bf16 %v904
      %v918 = vunpack.c.h.bf16 %v904
      %v919 = vunpack.c.l.bf16 %v905
      %v920 = vunpack.c.h.bf16 %v905
      %v921 = vunpack.c.l.bf16 %v906
      %v922 = vunpack.c.h.bf16 %v906
      %v923 = vmul.f32 %v907, %v636
      %v924 = vmul.f32 %v908, %v640
      %v925 = vmul.f32 %v909, %v636
      %v926 = vmul.f32 %v910, %v640
      %v927 = vmul.f32 %v911, %v636
      %v928 = vmul.f32 %v912, %v640
      %v929 = vmul.f32 %v913, %v636
      %v930 = vmul.f32 %v914, %v640
      %v931 = vmul.f32 %v915, %v636
      %v932 = vmul.f32 %v916, %v640
      %v933 = vmul.f32 %v917, %v636
      %v934 = vmul.f32 %v918, %v640
      %v935 = vmul.f32 %v919, %v636
      %v936 = vmul.f32 %v920, %v640
      %v937 = vmul.f32 %v921, %v636
      %v938 = vmul.f32 %v922, %v640
      %940 = vset.pattern.permute.xlu0 0
      %941 = vperm.xlu0 %940, %v891
      %v942 = vpop.permute.xlu0 %941
      %945 = vset.pattern.permute.xlu0 0
      %946 = vperm.xlu0 %945, %v892
      %v947 = vpop.permute.xlu0 %946
      %950 = vset.pattern.permute.xlu0 0
      %951 = vperm.xlu0 %950, %v893
      %v952 = vpop.permute.xlu0 %951
      %955 = vset.pattern.permute.xlu0 0
      %956 = vperm.xlu0 %955, %v894
      %v957 = vpop.permute.xlu0 %956
      %960 = vset.pattern.permute.xlu0 0
      %961 = vperm.xlu0 %960, %v895
      %v962 = vpop.permute.xlu0 %961
      %965 = vset.pattern.permute.xlu0 0
      %966 = vperm.xlu0 %965, %v896
      %v967 = vpop.permute.xlu0 %966
      %970 = vset.pattern.permute.xlu0 0
      %971 = vperm.xlu0 %970, %v897
      %v972 = vpop.permute.xlu0 %971
      %975 = vset.pattern.permute.xlu0 0
      %976 = vperm.xlu0 %975, %v898
      %v977 = vpop.permute.xlu0 %976
      %v979 = vmul.f32 %v942, %v923
      %v980 = vmul.f32 %v942, %v924
      %v981 = vmul.f32 %v947, %v925
      %v982 = vmul.f32 %v947, %v926
      %v983 = vmul.f32 %v952, %v927
      %v984 = vmul.f32 %v952, %v928
      %v985 = vmul.f32 %v957, %v929
      %v986 = vmul.f32 %v957, %v930
      %v987 = vmul.f32 %v962, %v931
      %v988 = vmul.f32 %v962, %v932
      %v989 = vmul.f32 %v967, %v933
      %v990 = vmul.f32 %v967, %v934
      %v991 = vmul.f32 %v972, %v935
      %v992 = vmul.f32 %v972, %v936
      %v993 = vmul.f32 %v977, %v937
      %v994 = vmul.f32 %v977, %v938
      %v995 = vadd.f32 %v875, %v979
      %v996 = vadd.f32 %v876, %v980
      %v997 = vadd.f32 %v877, %v981
      %v998 = vadd.f32 %v878, %v982
      %v999 = vadd.f32 %v879, %v983
      %v1000 = vadd.f32 %v880, %v984
      %v1001 = vadd.f32 %v881, %v985
      %v1002 = vadd.f32 %v882, %v986
      %v1003 = vadd.f32 %v883, %v987
      %v1004 = vadd.f32 %v884, %v988
      %v1005 = vadd.f32 %v885, %v989
      %v1006 = vadd.f32 %v886, %v990
      %v1007 = vadd.f32 %v887, %v991
      %v1008 = vadd.f32 %v888, %v992
      %v1009 = vadd.f32 %v889, %v993
      %v1010 = vadd.f32 %v890, %v994
      %v1011 = vpack.c.bf16 %v997, %v995
      %v1012 = vpack.c.bf16 %v998, %v996
      %v1013 = vpack.c.bf16 %v1001, %v999
      %v1014 = vpack.c.bf16 %v1002, %v1000
      %v1015 = vpack.c.bf16 %v1005, %v1003
      %v1016 = vpack.c.bf16 %v1006, %v1004
      %v1017 = vpack.c.bf16 %v1009, %v1007
      %v1018 = vpack.c.bf16 %v1010, %v1008
      %v1027 = vunpack.c.l.b16 %v1011
      %v1028 = vunpack.c.l.b16 %v1012
      %v1029 = vunpack.c.h.b16 %v1011
      %v1030 = vunpack.c.h.b16 %v1012
      %v1031 = vunpack.c.l.b16 %v1013
      %v1032 = vunpack.c.l.b16 %v1014
      %v1033 = vunpack.c.h.b16 %v1013
      %v1034 = vunpack.c.h.b16 %v1014
      %v1035 = vunpack.c.l.b16 %v1015
      %v1036 = vunpack.c.l.b16 %v1016
      %v1037 = vunpack.c.h.b16 %v1015
      %v1038 = vunpack.c.h.b16 %v1016
      %v1039 = vunpack.c.l.b16 %v1017
      %v1040 = vunpack.c.l.b16 %v1018
      %v1041 = vunpack.c.h.b16 %v1017
      %v1042 = vunpack.c.h.b16 %v1018
      %v1043 = vpack.c.b16 %v1028, %v1027
      %v1044 = vpack.c.b16 %v1030, %v1029
      %v1045 = vpack.c.b16 %v1032, %v1031
      %v1046 = vpack.c.b16 %v1034, %v1033
      %v1047 = vpack.c.b16 %v1036, %v1035
      %v1048 = vpack.c.b16 %v1038, %v1037
      %v1049 = vpack.c.b16 %v1040, %v1039
      %v1050 = vpack.c.b16 %v1042, %v1041
      %1059 = vst [vmem:[%s481 + $0x40] sm:$0xff] %v1043
      %1060 = vst [vmem:[%s481 + $0x48] sm:$0xff] %v1044
      %1061 = vst [vmem:[%s481 + $0x50] sm:$0xff] %v1045
      %1062 = vst [vmem:[%s481 + $0x58] sm:$0xff] %v1046
      %1063 = vst [vmem:[%s481 + $0x60] sm:$0xff] %v1047
      %1064 = vst [vmem:[%s481 + $0x68] sm:$0xff] %v1048
      %1065 = vst [vmem:[%s481 + $0x70] sm:$0xff] %v1049
      %1066 = vst [vmem:[%s481 + $0x78] sm:$0xff] %v1050
      %s1067 = smul.u32 2, %s23
      %p1068 = scmp.lt.s32.totalorder %s22, 1
      %s1069 = scalar_select %p1068, %s22, 1
      %p1070 = scmp.lt.s32.totalorder %s1067, 1
      %s1071 = scalar_select %p1070, %s1067, 1
      %s1072 = smul.addr %s1069, 32
      %s1073 = sadd.s32 %s1071, %s1072
      %s1074 = smul.addr %s1073, 4
      %s1075 = scalar_lea.vmem %s7, %s1074
      // Predicated region
      $region49: #{mm_block5_pallas.3} parent=47 // pred_check
        %p1076 = pneg %p240
      $region50: #{mm_block5_pallas.3} parent=47 // pred_check_branch
        %1078 = sbr.rel (%p1076) target = $region52
      $region51: #{mm_block5_pallas.3} parent=47 // pred_region
        %s1079 = smul.u32 2, %s23
      $region52: #{mm_block5_pallas.3} parent=47 // pred_fallthru
        _
    $region48: #{mm_block5_pallas.3} parent=5 // pred_fallthru
      _
    %p1080 = scmp.le.s32.totalorder 2, %s13
    // Predicated region
    $region53: #{mm_block5_pallas.3} parent=5 // pred_check
      %p1081 = pneg %p1080
    $region54: #{mm_block5_pallas.3} parent=5 // pred_check_branch
      %1083 = sbr.rel (%p1081) target = $region56
    $region55: #{mm_block5_pallas.3} parent=5 // pred_region
      %s1084 = ssub.s32 %s13, 2
      // Predicated region
      $region57: #{mm_block5_pallas.3} parent=55 // pred_check
        %p1085 = pneg %p246
      $region58: #{mm_block5_pallas.3} parent=55 // pred_check_branch
        %1087 = sbr.rel (%p1085) target = $region60
      $region59: #{mm_block5_pallas.3} parent=55 // pred_region
        %s1088 = smul.u32 2, %s25
        %p1089 = scmp.lt.s32.totalorder %s24, 1
        %s1090 = scalar_select %p1089, %s24, 1
        %p1091 = scmp.lt.s32.totalorder %s1088, 1
        %s1092 = scalar_select %p1091, %s1088, 1
        %s1093 = smul.addr %s1090, 32
        %s1094 = sadd.s32 %s1092, %s1093
        %s1095 = smul.addr %s1094, 4
        %s1096 = scalar_lea.vmem %s7, %s1095
      $region60: #{mm_block5_pallas.3} parent=55 // pred_fallthru
        _
    $region56: #{mm_block5_pallas.3} parent=5 // pred_fallthru
      _
  $region6: #{mm_block5_pallas.3} parent=0 // loop_footer
    %s17 = sadd.s32 1, %s13
  $region7: #{mm_block5_pallas.3} parent=0 // loop_footer_branch
    %12 = sbr.rel target = $region3
  $region8: #{mm_block5_pallas.3} parent=0 // loop_exit
    _

</llo_original>
